<compile_context>
chip_gen: v5e
topology: v5e:2x2
jax: 0.10.0
libtpu: 0.0.40
codegen_flags: <defaults>
</compile_context>

<pallas_src>
import jax
import jax.numpy as jnp
from jax.experimental import pallas as pl
from jax.experimental.pallas import tpu as pltpu


# ----------------------------- Pallas kernels ------------------------------ #

def _conv_relu_pool_kernel(p_ref, w_ref, b_ref, o_ref):
    """Fused conv(matmul) + bias + ReLU + 2x2 max-pool for one image.

    p_ref: (1, 4, K, NPIX)  im2col patches; axis 1 = 4 pool-window phases.
    w_ref: (OC, K)          conv weight, K flattened in torch (c, kh, kw) order.
    b_ref: (OC, 1)          conv bias (broadcast over lanes).
    o_ref: (1, OC, NPIX)    pooled ReLU output, NPIX = PH*PW pooled pixels.
    """
    w = w_ref[...]
    # One lane-dense MXU matmul per pool-window phase; max-reduce the 4 phases.
    acc = jnp.dot(w, p_ref[0, 0], preferred_element_type=jnp.float32)
    for d in range(1, 4):
        acc = jnp.maximum(
            acc, jnp.dot(w, p_ref[0, d], preferred_element_type=jnp.float32))
    # max-pool commutes with (+bias, ReLU): relu(max(y)+b) == max(relu(y+b)).
    o_ref[0] = jnp.maximum(acc + b_ref[...], 0.0).astype(o_ref.dtype)


def _fc3_kernel(h_ref, w1_ref, b1_ref, w2_ref, b2_ref, w3_ref, b3_ref, o_ref):
    """fc1 -> ReLU -> fc2 -> ReLU -> fc3 fully fused; intermediates stay in VMEM."""
    a = jnp.dot(h_ref[...], w1_ref[...], preferred_element_type=jnp.float32)
    a = jnp.maximum(a + b1_ref[...], 0.0)
    a = jnp.dot(a, w2_ref[...], preferred_element_type=jnp.float32)
    a = jnp.maximum(a + b2_ref[...], 0.0)
    a = jnp.dot(a, w3_ref[...], preferred_element_type=jnp.float32) + b3_ref[...]
    o_ref[...] = a.astype(o_ref.dtype)


# ------------------------------ JAX glue code ------------------------------ #

def _im2col_pool_phases(x, k):
    """x: (B, C, H, W) -> (B, 4, C*k*k, PH*PW) patches, pool-phase major.

    P[b, 2*dh+dw, :, ph*PW+pw] is the C*k*k patch feeding conv output pixel
    (oh, ow) = (2*ph+dh, 2*pw+dw).  K rows are ordered (c, kh, kw) to match
    torch's weight.reshape(OC, C*k*k).
    """
    B, C, H, W = x.shape
    OH, OW = H - k + 1, W - k + 1
    PH, PW = OH // 2, OW // 2
    taps = [x[:, :, kh:kh + OH, kw:kw + OW] for kh in range(k) for kw in range(k)]
    t = jnp.stack(taps, axis=2)                    # (B, C, k*k, OH, OW)
    t = t.reshape(B, C, k * k, PH, 2, PW, 2)       # split OH/OW -> (pool, phase)
    t = t.transpose(0, 4, 6, 1, 2, 3, 5)           # (B, dh, dw, C, k*k, PH, PW)
    return t.reshape(B, 4, C * k * k, PH * PW), PH, PW


def conv_relu_pool(x_nchw, wm, b, *, k=5):
    """Fused Conv2d(k, stride 1, valid) + ReLU + MaxPool2d(2,2).

    Returns (B, OC, PH*PW) in NCHW-flattened order, plus (PH, PW).
    """
    B = x_nchw.shape[0]
    OC, K = wm.shape
    P, PH, PW = _im2col_pool_phases(x_nchw, k)     # (B, 4, K, PH*PW)
    NPIX = PH * PW
    out = pl.pallas_call(
        _conv_relu_pool_kernel,
        out_shape=jax.ShapeDtypeStruct((B, OC, NPIX), jnp.float32),
        grid=(B,),
        in_specs=[
            pl.BlockSpec((1, 4, K, NPIX), lambda i: (i, 0, 0, 0)),
            pl.BlockSpec((OC, K), lambda i: (0, 0)),   # weight resident across grid
            pl.BlockSpec((OC, 1), lambda i: (0, 0)),   # bias resident across grid
        ],
        out_specs=pl.BlockSpec((1, OC, NPIX), lambda i: (i, 0, 0)),
        compiler_params=pltpu.CompilerParams(
            dimension_semantics=("parallel",)),        # v7x: shard batch over 2 TCs
    )(P, wm, b)
    return out, PH, PW


def fc_stack(h, pp):
    B = h.shape[0]
    vmem = pl.BlockSpec(memory_space=pltpu.MemorySpace.VMEM)
    return pl.pallas_call(
        _fc3_kernel,
        out_shape=jax.ShapeDtypeStruct((B, 10), jnp.float32),
        in_specs=[vmem] * 7,
        out_specs=vmem,
    )(h, pp["fw1"], pp["fb1"], pp["fw2"], pp["fb2"], pp["fw3"], pp["fb3"])


def net_forward(x, pp):
    B = x.shape[0]
    # conv1 -> relu -> pool : (B, 6, 14*14)
    h, PH, PW = conv_relu_pool(x, pp["w1"], pp["b1"])
    h = h.reshape(B, 6, PH, PW)                    # contiguous (free) reshape
    # conv2 -> relu -> pool : (B, 16, 5*5)
    h, PH, PW = conv_relu_pool(h, pp["w2"], pp["b2"])
    # flatten exactly like torch's x.view(-1, 16*5*5): order (c, h, w)
    h = h.reshape(B, 16 * PH * PW)                 # contiguous (free) reshape
    # fused fc1 -> relu -> fc2 -> relu -> fc3
    return fc_stack(h, pp)


def prepare_params(params):
    """One-time host-side layout prep (reshape/transpose outside jit)."""
    return {
        "w1": params["conv1_w"].reshape(6, 3 * 5 * 5),
        "b1": params["conv1_b"].reshape(6, 1),
        "w2": params["conv2_w"].reshape(16, 6 * 5 * 5),
        "b2": params["conv2_b"].reshape(16, 1),
        "fw1": params["fc1_w"].T, "fb1": params["fc1_b"].reshape(1, -1),
        "fw2": params["fc2_w"].T, "fb2": params["fc2_b"].reshape(1, -1),
        "fw3": params["fc3_w"].T, "fb3": params["fc3_b"].reshape(1, -1),
    }


def init_params(key):
    """Deterministic init mimicking PyTorch default U(-1/sqrt(fan_in), +)."""
    def u(k, shape, fan_in):
        bound = 1.0 / float(fan_in) ** 0.5
        return jax.random.uniform(k, shape, jnp.float32, -bound, bound)

    ks = jax.random.split(key, 10)
    return {
        "conv1_w": u(ks[0], (6, 3, 5, 5), 3 * 5 * 5),
        "conv1_b": u(ks[1], (6,), 3 * 5 * 5),
        "conv2_w": u(ks[2], (16, 6, 5, 5), 6 * 5 * 5),
        "conv2_b": u(ks[3], (16,), 6 * 5 * 5),
        "fc1_w": u(ks[4], (120, 400), 400),
        "fc1_b": u(ks[5], (120,), 400),
        "fc2_w": u(ks[6], (84, 120), 120),
        "fc2_b": u(ks[7], (84,), 120),
        "fc3_w": u(ks[8], (10, 84), 84),
        "fc3_b": u(ks[9], (10,), 84),
    }


if __name__ == "__main__":
    key = jax.random.PRNGKey(0)
    k_params, k_x = jax.random.split(key)
    params = init_params(k_params)
    prep = prepare_params(params)
    # CIFAR-shaped input implied by fc1 = Linear(16*5*5, 120): (B, 3, 32, 32)
    x = jax.random.normal(k_x, (2, 3, 32, 32), dtype=jnp.float32)

    out = jax.jit(net_forward)(x, prep)
    out = jax.block_until_ready(out)
    assert out.shape == (2, 10) and out.dtype == jnp.float32
    print("KERNEL_OK")
</pallas_src>

<mosaic_0001>
module attributes {stable_mosaic.version = 11 : i64} {
  func.func @_conv_relu_pool_kernel(%arg0: i32, %arg1: memref<1x4x75x196xf32, #tpu.memory_space<vmem>>, %arg2: memref<6x75xf32, #tpu.memory_space<vmem>>, %arg3: memref<6x1xf32, #tpu.memory_space<vmem>>, %arg4: memref<1x6x196xf32, #tpu.memory_space<vmem>>) attributes {dimension_semantics = [#tpu.dimension_semantics<parallel>], iteration_bounds = array<i64: 2>, scalar_prefetch = 0 : i64, scratch_operands = 0 : i64, tpu.core_type = #tpu.core_type<tc>, window_params = [{transform_indices = @transform_0, window_bounds = array<i64: 1, 4, 75, 196>}, {pipeline_mode = #tpu.pipeline_mode<synchronous>, transform_indices = @transform_1, window_bounds = array<i64: 6, 75>}, {pipeline_mode = #tpu.pipeline_mode<synchronous>, transform_indices = @transform_2, window_bounds = array<i64: 6, 1>}, {transform_indices = @transform_3, window_bounds = array<i64: 1, 6, 196>}]} {
    %c0 = arith.constant 0 : index
    %c0_0 = arith.constant 0 : index
    %0 = vector.load %arg2[%c0, %c0_0] : memref<6x75xf32, #tpu.memory_space<vmem>>, vector<6x75xf32>
    %c0_1 = arith.constant 0 : index
    %c0_2 = arith.constant 0 : index
    %c0_3 = arith.constant 0 : index
    %c0_4 = arith.constant 0 : index
    %1 = vector.load %arg1[%c0_1, %c0_2, %c0_3, %c0_4] : memref<1x4x75x196xf32, #tpu.memory_space<vmem>>, vector<1x1x75x196xf32>
    %2 = vector.shape_cast %1 : vector<1x1x75x196xf32> to vector<75x196xf32>
    %cst = arith.constant dense<0.000000e+00> : vector<6x196xf32>
    %3 = tpu.matmul %0, %2, %cst {dimension_numbers = #tpu.dot_dimension_numbers<[1], [0], [0], [1], [0, 0, 1, 1], [], []>} : vector<6x75xf32>, vector<75x196xf32>, vector<6x196xf32> -> vector<6x196xf32>
    %c0_5 = arith.constant 0 : index
    %c1 = arith.constant 1 : index
    %c0_6 = arith.constant 0 : index
    %c0_7 = arith.constant 0 : index
    %4 = vector.load %arg1[%c0_5, %c1, %c0_6, %c0_7] : memref<1x4x75x196xf32, #tpu.memory_space<vmem>>, vector<1x1x75x196xf32>
    %5 = vector.shape_cast %4 : vector<1x1x75x196xf32> to vector<75x196xf32>
    %cst_8 = arith.constant dense<0.000000e+00> : vector<6x196xf32>
    %6 = tpu.matmul %0, %5, %cst_8 {dimension_numbers = #tpu.dot_dimension_numbers<[1], [0], [0], [1], [0, 0, 1, 1], [], []>} : vector<6x75xf32>, vector<75x196xf32>, vector<6x196xf32> -> vector<6x196xf32>
    %7 = arith.maximumf %3, %6 : vector<6x196xf32>
    %c0_9 = arith.constant 0 : index
    %c2 = arith.constant 2 : index
    %c0_10 = arith.constant 0 : index
    %c0_11 = arith.constant 0 : index
    %8 = vector.load %arg1[%c0_9, %c2, %c0_10, %c0_11] : memref<1x4x75x196xf32, #tpu.memory_space<vmem>>, vector<1x1x75x196xf32>
    %9 = vector.shape_cast %8 : vector<1x1x75x196xf32> to vector<75x196xf32>
    %cst_12 = arith.constant dense<0.000000e+00> : vector<6x196xf32>
    %10 = tpu.matmul %0, %9, %cst_12 {dimension_numbers = #tpu.dot_dimension_numbers<[1], [0], [0], [1], [0, 0, 1, 1], [], []>} : vector<6x75xf32>, vector<75x196xf32>, vector<6x196xf32> -> vector<6x196xf32>
    %11 = arith.maximumf %7, %10 : vector<6x196xf32>
    %c0_13 = arith.constant 0 : index
    %c3 = arith.constant 3 : index
    %c0_14 = arith.constant 0 : index
    %c0_15 = arith.constant 0 : index
    %12 = vector.load %arg1[%c0_13, %c3, %c0_14, %c0_15] : memref<1x4x75x196xf32, #tpu.memory_space<vmem>>, vector<1x1x75x196xf32>
    %13 = vector.shape_cast %12 : vector<1x1x75x196xf32> to vector<75x196xf32>
    %cst_16 = arith.constant dense<0.000000e+00> : vector<6x196xf32>
    %14 = tpu.matmul %0, %13, %cst_16 {dimension_numbers = #tpu.dot_dimension_numbers<[1], [0], [0], [1], [0, 0, 1, 1], [], []>} : vector<6x75xf32>, vector<75x196xf32>, vector<6x196xf32> -> vector<6x196xf32>
    %15 = arith.maximumf %11, %14 : vector<6x196xf32>
    %c0_17 = arith.constant 0 : index
    %c0_18 = arith.constant 0 : index
    %16 = vector.load %arg3[%c0_17, %c0_18] : memref<6x1xf32, #tpu.memory_space<vmem>>, vector<6x1xf32>
    %17 = vector.broadcast %16 : vector<6x1xf32> to vector<6x196xf32>
    %18 = arith.addf %15, %17 : vector<6x196xf32>
    %cst_19 = arith.constant 0.000000e+00 : f32
    %19 = vector.broadcast %cst_19 : f32 to vector<6x196xf32>
    %20 = arith.maximumf %18, %19 : vector<6x196xf32>
    %c0_20 = arith.constant 0 : index
    %c0_21 = arith.constant 0 : index
    %c0_22 = arith.constant 0 : index
    %21 = vector.load %arg4[%c0_20, %c0_21, %c0_22] : memref<1x6x196xf32, #tpu.memory_space<vmem>>, vector<1x6x196xf32>
    %22 = vector.shape_cast %21 : vector<1x6x196xf32> to vector<6x196xf32>
    %23 = vector.shape_cast %20 : vector<6x196xf32> to vector<1x6x196xf32>
    tpu.vector_store %arg4[%c0_20, %c0_21, %c0_22], %23 {strides = array<i32>} : memref<1x6x196xf32, #tpu.memory_space<vmem>>, vector<1x6x196xf32>,
    return
  }
  func.func @transform_0(%arg0: i32) -> (i32, i32, i32, i32) {
    %c0_i32 = arith.constant 0 : i32
    %c0_i32_0 = arith.constant 0 : i32
    %c0_i32_1 = arith.constant 0 : i32
    %c0_i32_2 = arith.constant 0 : i32
    return %arg0, %c0_i32, %c0_i32_0, %c0_i32_1 : i32, i32, i32, i32
  }
  func.func @transform_1(%arg0: i32) -> (i32, i32) {
    %c0_i32 = arith.constant 0 : i32
    %c0_i32_0 = arith.constant 0 : i32
    %c0_i32_1 = arith.constant 0 : i32
    return %c0_i32, %c0_i32_0 : i32, i32
  }
  func.func @transform_2(%arg0: i32) -> (i32, i32) {
    %c0_i32 = arith.constant 0 : i32
    %c0_i32_0 = arith.constant 0 : i32
    %c0_i32_1 = arith.constant 0 : i32
    return %c0_i32, %c0_i32_0 : i32, i32
  }
  func.func @transform_3(%arg0: i32) -> (i32, i32, i32) {
    %c0_i32 = arith.constant 0 : i32
    %c0_i32_0 = arith.constant 0 : i32
    %c0_i32_1 = arith.constant 0 : i32
    return %arg0, %c0_i32, %c0_i32_0 : i32, i32, i32
  }
}

module attributes {stable_mosaic.version = 11 : i64} {
  func.func @_conv_relu_pool_kernel(%arg0: i32, %arg1: memref<1x4x150x25xf32, #tpu.memory_space<vmem>>, %arg2: memref<16x150xf32, #tpu.memory_space<vmem>>, %arg3: memref<16x1xf32, #tpu.memory_space<vmem>>, %arg4: memref<1x16x25xf32, #tpu.memory_space<vmem>>) attributes {dimension_semantics = [#tpu.dimension_semantics<parallel>], iteration_bounds = array<i64: 2>, scalar_prefetch = 0 : i64, scratch_operands = 0 : i64, tpu.core_type = #tpu.core_type<tc>, window_params = [{transform_indices = @transform_0, window_bounds = array<i64: 1, 4, 150, 25>}, {pipeline_mode = #tpu.pipeline_mode<synchronous>, transform_indices = @transform_1, window_bounds = array<i64: 16, 150>}, {pipeline_mode = #tpu.pipeline_mode<synchronous>, transform_indices = @transform_2, window_bounds = array<i64: 16, 1>}, {transform_indices = @transform_3, window_bounds = array<i64: 1, 16, 25>}]} {
    %c0 = arith.constant 0 : index
    %c0_0 = arith.constant 0 : index
    %0 = vector.load %arg2[%c0, %c0_0] : memref<16x150xf32, #tpu.memory_space<vmem>>, vector<16x150xf32>
    %c0_1 = arith.constant 0 : index
    %c0_2 = arith.constant 0 : index
    %c0_3 = arith.constant 0 : index
    %c0_4 = arith.constant 0 : index
    %1 = vector.load %arg1[%c0_1, %c0_2, %c0_3, %c0_4] : memref<1x4x150x25xf32, #tpu.memory_space<vmem>>, vector<1x1x150x25xf32>
    %2 = vector.shape_cast %1 : vector<1x1x150x25xf32> to vector<150x25xf32>
    %cst = arith.constant dense<0.000000e+00> : vector<16x25xf32>
    %3 = tpu.matmul %0, %2, %cst {dimension_numbers = #tpu.dot_dimension_numbers<[1], [0], [0], [1], [0, 0, 1, 1], [], []>} : vector<16x150xf32>, vector<150x25xf32>, vector<16x25xf32> -> vector<16x25xf32>
    %c0_5 = arith.constant 0 : index
    %c1 = arith.constant 1 : index
    %c0_6 = arith.constant 0 : index
    %c0_7 = arith.constant 0 : index
    %4 = vector.load %arg1[%c0_5, %c1, %c0_6, %c0_7] : memref<1x4x150x25xf32, #tpu.memory_space<vmem>>, vector<1x1x150x25xf32>
    %5 = vector.shape_cast %4 : vector<1x1x150x25xf32> to vector<150x25xf32>
    %cst_8 = arith.constant dense<0.000000e+00> : vector<16x25xf32>
    %6 = tpu.matmul %0, %5, %cst_8 {dimension_numbers = #tpu.dot_dimension_numbers<[1], [0], [0], [1], [0, 0, 1, 1], [], []>} : vector<16x150xf32>, vector<150x25xf32>, vector<16x25xf32> -> vector<16x25xf32>
    %7 = arith.maximumf %3, %6 : vector<16x25xf32>
    %c0_9 = arith.constant 0 : index
    %c2 = arith.constant 2 : index
    %c0_10 = arith.constant 0 : index
    %c0_11 = arith.constant 0 : index
    %8 = vector.load %arg1[%c0_9, %c2, %c0_10, %c0_11] : memref<1x4x150x25xf32, #tpu.memory_space<vmem>>, vector<1x1x150x25xf32>
    %9 = vector.shape_cast %8 : vector<1x1x150x25xf32> to vector<150x25xf32>
    %cst_12 = arith.constant dense<0.000000e+00> : vector<16x25xf32>
    %10 = tpu.matmul %0, %9, %cst_12 {dimension_numbers = #tpu.dot_dimension_numbers<[1], [0], [0], [1], [0, 0, 1, 1], [], []>} : vector<16x150xf32>, vector<150x25xf32>, vector<16x25xf32> -> vector<16x25xf32>
    %11 = arith.maximumf %7, %10 : vector<16x25xf32>
    %c0_13 = arith.constant 0 : index
    %c3 = arith.constant 3 : index
    %c0_14 = arith.constant 0 : index
    %c0_15 = arith.constant 0 : index
    %12 = vector.load %arg1[%c0_13, %c3, %c0_14, %c0_15] : memref<1x4x150x25xf32, #tpu.memory_space<vmem>>, vector<1x1x150x25xf32>
    %13 = vector.shape_cast %12 : vector<1x1x150x25xf32> to vector<150x25xf32>
    %cst_16 = arith.constant dense<0.000000e+00> : vector<16x25xf32>
    %14 = tpu.matmul %0, %13, %cst_16 {dimension_numbers = #tpu.dot_dimension_numbers<[1], [0], [0], [1], [0, 0, 1, 1], [], []>} : vector<16x150xf32>, vector<150x25xf32>, vector<16x25xf32> -> vector<16x25xf32>
    %15 = arith.maximumf %11, %14 : vector<16x25xf32>
    %c0_17 = arith.constant 0 : index
    %c0_18 = arith.constant 0 : index
    %16 = vector.load %arg3[%c0_17, %c0_18] : memref<16x1xf32, #tpu.memory_space<vmem>>, vector<16x1xf32>
    %17 = vector.broadcast %16 : vector<16x1xf32> to vector<16x25xf32>
    %18 = arith.addf %15, %17 : vector<16x25xf32>
    %cst_19 = arith.constant 0.000000e+00 : f32
    %19 = vector.broadcast %cst_19 : f32 to vector<16x25xf32>
    %20 = arith.maximumf %18, %19 : vector<16x25xf32>
    %c0_20 = arith.constant 0 : index
    %c0_21 = arith.constant 0 : index
    %c0_22 = arith.constant 0 : index
    %21 = vector.load %arg4[%c0_20, %c0_21, %c0_22] : memref<1x16x25xf32, #tpu.memory_space<vmem>>, vector<1x16x25xf32>
    %22 = vector.shape_cast %21 : vector<1x16x25xf32> to vector<16x25xf32>
    %23 = vector.shape_cast %20 : vector<16x25xf32> to vector<1x16x25xf32>
    tpu.vector_store %arg4[%c0_20, %c0_21, %c0_22], %23 {strides = array<i32>} : memref<1x16x25xf32, #tpu.memory_space<vmem>>, vector<1x16x25xf32>,
    return
  }
  func.func @transform_0(%arg0: i32) -> (i32, i32, i32, i32) {
    %c0_i32 = arith.constant 0 : i32
    %c0_i32_0 = arith.constant 0 : i32
    %c0_i32_1 = arith.constant 0 : i32
    %c0_i32_2 = arith.constant 0 : i32
    return %arg0, %c0_i32, %c0_i32_0, %c0_i32_1 : i32, i32, i32, i32
  }
  func.func @transform_1(%arg0: i32) -> (i32, i32) {
    %c0_i32 = arith.constant 0 : i32
    %c0_i32_0 = arith.constant 0 : i32
    %c0_i32_1 = arith.constant 0 : i32
    return %c0_i32, %c0_i32_0 : i32, i32
  }
  func.func @transform_2(%arg0: i32) -> (i32, i32) {
    %c0_i32 = arith.constant 0 : i32
    %c0_i32_0 = arith.constant 0 : i32
    %c0_i32_1 = arith.constant 0 : i32
    return %c0_i32, %c0_i32_0 : i32, i32
  }
  func.func @transform_3(%arg0: i32) -> (i32, i32, i32) {
    %c0_i32 = arith.constant 0 : i32
    %c0_i32_0 = arith.constant 0 : i32
    %c0_i32_1 = arith.constant 0 : i32
    return %arg0, %c0_i32, %c0_i32_0 : i32, i32, i32
  }
}

module attributes {stable_mosaic.version = 11 : i64} {
  func.func @_fc3_kernel(%arg0: memref<2x400xf32, #tpu.memory_space<vmem>>, %arg1: memref<400x120xf32, #tpu.memory_space<vmem>>, %arg2: memref<1x120xf32, #tpu.memory_space<vmem>>, %arg3: memref<120x84xf32, #tpu.memory_space<vmem>>, %arg4: memref<1x84xf32, #tpu.memory_space<vmem>>, %arg5: memref<84x10xf32, #tpu.memory_space<vmem>>, %arg6: memref<1x10xf32, #tpu.memory_space<vmem>>, %arg7: memref<2x10xf32, #tpu.memory_space<vmem>>) attributes {dimension_semantics = [], scalar_prefetch = 0 : i64, scratch_operands = 0 : i64, tpu.core_type = #tpu.core_type<tc>} {
    %c0 = arith.constant 0 : index
    %c0_0 = arith.constant 0 : index
    %0 = vector.load %arg0[%c0, %c0_0] : memref<2x400xf32, #tpu.memory_space<vmem>>, vector<2x400xf32>
    %c0_1 = arith.constant 0 : index
    %c0_2 = arith.constant 0 : index
    %1 = vector.load %arg1[%c0_1, %c0_2] : memref<400x120xf32, #tpu.memory_space<vmem>>, vector<400x120xf32>
    %cst = arith.constant dense<0.000000e+00> : vector<2x120xf32>
    %2 = tpu.matmul %0, %1, %cst {dimension_numbers = #tpu.dot_dimension_numbers<[1], [0], [0], [1], [0, 0, 1, 1], [], []>} : vector<2x400xf32>, vector<400x120xf32>, vector<2x120xf32> -> vector<2x120xf32>
    %c0_3 = arith.constant 0 : index
    %c0_4 = arith.constant 0 : index
    %3 = vector.load %arg2[%c0_3, %c0_4] : memref<1x120xf32, #tpu.memory_space<vmem>>, vector<1x120xf32>
    %4 = vector.broadcast %3 : vector<1x120xf32> to vector<2x120xf32>
    %5 = arith.addf %2, %4 : vector<2x120xf32>
    %cst_5 = arith.constant 0.000000e+00 : f32
    %6 = vector.broadcast %cst_5 : f32 to vector<2x120xf32>
    %7 = arith.maximumf %5, %6 : vector<2x120xf32>
    %c0_6 = arith.constant 0 : index
    %c0_7 = arith.constant 0 : index
    %8 = vector.load %arg3[%c0_6, %c0_7] : memref<120x84xf32, #tpu.memory_space<vmem>>, vector<120x84xf32>
    %cst_8 = arith.constant dense<0.000000e+00> : vector<2x84xf32>
    %9 = tpu.matmul %7, %8, %cst_8 {dimension_numbers = #tpu.dot_dimension_numbers<[1], [0], [0], [1], [0, 0, 1, 1], [], []>} : vector<2x120xf32>, vector<120x84xf32>, vector<2x84xf32> -> vector<2x84xf32>
    %c0_9 = arith.constant 0 : index
    %c0_10 = arith.constant 0 : index
    %10 = vector.load %arg4[%c0_9, %c0_10] : memref<1x84xf32, #tpu.memory_space<vmem>>, vector<1x84xf32>
    %11 = vector.broadcast %10 : vector<1x84xf32> to vector<2x84xf32>
    %12 = arith.addf %9, %11 : vector<2x84xf32>
    %cst_11 = arith.constant 0.000000e+00 : f32
    %13 = vector.broadcast %cst_11 : f32 to vector<2x84xf32>
    %14 = arith.maximumf %12, %13 : vector<2x84xf32>
    %c0_12 = arith.constant 0 : index
    %c0_13 = arith.constant 0 : index
    %15 = vector.load %arg5[%c0_12, %c0_13] : memref<84x10xf32, #tpu.memory_space<vmem>>, vector<84x10xf32>
    %cst_14 = arith.constant dense<0.000000e+00> : vector<2x10xf32>
    %16 = tpu.matmul %14, %15, %cst_14 {dimension_numbers = #tpu.dot_dimension_numbers<[1], [0], [0], [1], [0, 0, 1, 1], [], []>} : vector<2x84xf32>, vector<84x10xf32>, vector<2x10xf32> -> vector<2x10xf32>
    %c0_15 = arith.constant 0 : index
    %c0_16 = arith.constant 0 : index
    %17 = vector.load %arg6[%c0_15, %c0_16] : memref<1x10xf32, #tpu.memory_space<vmem>>, vector<1x10xf32>
    %18 = vector.broadcast %17 : vector<1x10xf32> to vector<2x10xf32>
    %19 = arith.addf %16, %18 : vector<2x10xf32>
    %c0_17 = arith.constant 0 : index
    %c0_18 = arith.constant 0 : index
    %20 = vector.load %arg7[%c0_17, %c0_18] : memref<2x10xf32, #tpu.memory_space<vmem>>, vector<2x10xf32>
    tpu.vector_store %arg7[%c0_17, %c0_18], %19 {strides = array<i32>} : memref<2x10xf32, #tpu.memory_space<vmem>>, vector<2x10xf32>,
    return
  }
}

</mosaic_0001>

<llo_original>
// kernel: net_forward.3
$region0: #{net_forward.3}
  #allocation0 [shape = 'u32[]', space=smem, size = 0x4, offset = 0x4, fixed_abs, tag = 'smem constant byte address 0x4 - core index']
  #allocation1 [shape = 'u32[72,128]{1,0:T(1,128)}', space=vmem, size = 0x9000, scoped, tag = 'internal scratch']
  %s0 = inlined_call_operand.vmem [shape: f32[2,4,75,196], index: 0, kind: input, shape index: {}]
  %s1 = inlined_call_operand.vmem [shape: f32[6,75], index: 1, kind: input, shape index: {}]
  %s2 = inlined_call_operand.vmem [shape: f32[6,1], index: 2, kind: input, shape index: {}]
  %s3 = inlined_call_operand.vmem [shape: f32[2,6,196], index: 3, kind: output, shape index: {}]
  %s4 = sld [smem:[#allocation0]]
  $region45: #{net_forward.3} parent=0
    _
  %s6 = ssub.s32 1, %s4
  %s7 = scalar_select 0, %s6, %s4
  loop: start=0, step=1, limit=4
  $region2: #{net_forward.3} parent=0 // loop_pre_header
    _
  $region3: #{net_forward.3} parent=0 // loop_header
    %s9 = sphi 0, %s13
    %p10 = scmp.ge.s32.totalorder %s9, 4
    %s19 = sphi 0, %s21
    %s22 = sphi 0, %s19
    %s23 = sphi 0, %s22
    %s39 = sphi 0, %s23
    %s43 = sphi 0, %s43
    %s45 = sphi 0, %s43
    %s46 = sphi 0, %s45
    %s60 = sphi 0, %s46
    %s64 = sphi 0, %s64
    %s66 = sphi 0, %s64
    %s67 = sphi 0, %s66
    %s81 = sphi 0, %s67
    %s87 = sphi 0, %s89
    %s90 = sphi 0, %s87
    %s91 = sphi 0, %s90
    %s107 = sphi 0, %s91
  $region4: #{net_forward.3} parent=0 // loop_header_branch
    %12 = sbr.rel (%p10) target = $region8
  $region5: #{net_forward.3} parent=0 // loop_body
    %s14 = ssub.s32 %s9, 1
    %s15 = ssub.s32 %s9, 2
    %s16 = sadd.s32 %s9, 1
    %s17 = ssub.s32 %s9, %s16
    %p18 = scmp.eq.s32.totalorder %s17, 0
    %s20 = sadd.s32 %s19, 1
    %s21 = scalar_select %p18, %s19, %s20
    %p24 = pneg %p18
    %p25 = scmp.eq.s32.totalorder %s9, 1
    %p26 = por %p24, %p25
    %p27 = scmp.ne.s32.totalorder %s19, %s22
    %p28 = scmp.eq.s32.totalorder %s9, 0
    %p29 = por %p27, %p28
    %p30 = scmp.ne.s32.totalorder %s19, %s22
    %p31 = scmp.eq.s32.totalorder %s14, 1
    %p32 = por %p30, %p31
    %p33 = scmp.ne.s32.totalorder %s22, %s23
    %p34 = scmp.eq.s32.totalorder %s14, 0
    %p35 = por %p33, %p34
    %p36 = scmp.ne.s32.totalorder %s22, %s23
    %p37 = scmp.eq.s32.totalorder %s15, 1
    %p38 = por %p36, %p37
    %p40 = scmp.ne.s32.totalorder %s23, %s39
    %p41 = scmp.eq.s32.totalorder %s15, 0
    %p42 = por %p40, %p41
    %s44 = sadd.s32 %s43, 1
    %p47 = scmp.eq.s32.totalorder %s9, 1
    %p48 = scmp.ne.s32.totalorder %s43, %s45
    %p49 = scmp.eq.s32.totalorder %s9, 0
    %p50 = por %p48, %p49
    %p51 = scmp.ne.s32.totalorder %s43, %s45
    %p52 = scmp.eq.s32.totalorder %s14, 1
    %p53 = por %p51, %p52
    %p54 = scmp.ne.s32.totalorder %s45, %s46
    %p55 = scmp.eq.s32.totalorder %s14, 0
    %p56 = por %p54, %p55
    %p57 = scmp.ne.s32.totalorder %s45, %s46
    %p58 = scmp.eq.s32.totalorder %s15, 1
    %p59 = por %p57, %p58
    %p61 = scmp.ne.s32.totalorder %s46, %s60
    %p62 = scmp.eq.s32.totalorder %s15, 0
    %p63 = por %p61, %p62
    %s65 = sadd.s32 %s64, 1
    %p68 = scmp.eq.s32.totalorder %s9, 1
    %p69 = scmp.ne.s32.totalorder %s64, %s66
    %p70 = scmp.eq.s32.totalorder %s9, 0
    %p71 = por %p69, %p70
    %p72 = scmp.ne.s32.totalorder %s64, %s66
    %p73 = scmp.eq.s32.totalorder %s14, 1
    %p74 = por %p72, %p73
    %p75 = scmp.ne.s32.totalorder %s66, %s67
    %p76 = scmp.eq.s32.totalorder %s14, 0
    %p77 = por %p75, %p76
    %p78 = scmp.ne.s32.totalorder %s66, %s67
    %p79 = scmp.eq.s32.totalorder %s15, 1
    %p80 = por %p78, %p79
    %p82 = scmp.ne.s32.totalorder %s67, %s81
    %p83 = scmp.eq.s32.totalorder %s15, 0
    %p84 = por %p82, %p83
    %s85 = ssub.s32 %s9, %s16
    %p86 = scmp.eq.s32.totalorder %s85, 0
    %s88 = sadd.s32 %s87, 1
    %s89 = scalar_select %p86, %s87, %s88
    %p92 = pneg %p86
    %p93 = scmp.eq.s32.totalorder %s9, 1
    %p94 = por %p92, %p93
    %p95 = scmp.ne.s32.totalorder %s87, %s90
    %p96 = scmp.eq.s32.totalorder %s9, 0
    %p97 = por %p95, %p96
    %p98 = scmp.ne.s32.totalorder %s87, %s90
    %p99 = scmp.eq.s32.totalorder %s14, 1
    %p100 = por %p98, %p99
    %p101 = scmp.ne.s32.totalorder %s90, %s91
    %p102 = scmp.eq.s32.totalorder %s14, 0
    %p103 = por %p101, %p102
    %p104 = scmp.ne.s32.totalorder %s90, %s91
    %p105 = scmp.eq.s32.totalorder %s15, 1
    %p106 = por %p104, %p105
    %p108 = scmp.ne.s32.totalorder %s91, %s107
    %p109 = scmp.eq.s32.totalorder %s15, 0
    %p110 = por %p108, %p109
    %p111 = scmp.le.s32.totalorder 1, %s9
    %p112 = scmp.lt.s32.totalorder %s9, 3
    %p113 = pnand %p111, %p112
    %p114 = pneg %p113
    // Predicated region
    $region9: #{net_forward.3} parent=5 // pred_check
      _
    $region10: #{net_forward.3} parent=5 // pred_check_branch
      %116 = sbr.rel (%p113) target = $region12
    $region11: #{net_forward.3} parent=5 // pred_region
      %s117 = ssub.s32 %s9, 1
      // Predicated region
      $region13: #{net_forward.3} parent=11 // pred_check
        %p118 = pneg %p56
      $region14: #{net_forward.3} parent=11 // pred_check_branch
        %120 = sbr.rel (%p118) target = $region16
      $region15: #{net_forward.3} parent=11 // pred_region
        _
      $region16: #{net_forward.3} parent=11 // pred_fallthru
        _
      // Predicated region
      $region17: #{net_forward.3} parent=11 // pred_check
        %p121 = pneg %p77
      $region18: #{net_forward.3} parent=11 // pred_check_branch
        %123 = sbr.rel (%p121) target = $region20
      $region19: #{net_forward.3} parent=11 // pred_region
        _
      $region20: #{net_forward.3} parent=11 // pred_fallthru
        _
    $region12: #{net_forward.3} parent=5 // pred_fallthru
      _
    %p124 = scmp.lt.s32.totalorder %s9, 2
    // Predicated region
    $region21: #{net_forward.3} parent=5 // pred_check
      %p125 = pneg %p124
    $region22: #{net_forward.3} parent=5 // pred_check_branch
      %127 = sbr.rel (%p125) target = $region24
    $region23: #{net_forward.3} parent=5 // pred_region
      // Predicated region
      $region25: #{net_forward.3} parent=23 // pred_check
        %p128 = pneg %p29
      $region26: #{net_forward.3} parent=23 // pred_check_branch
        %130 = sbr.rel (%p128) target = $region28
      $region27: #{net_forward.3} parent=23 // pred_region
        %p131 = scmp.lt.s32.totalorder %s9, 1
        %s132 = scalar_select %p131, %s9, 1
        %s133 = smul.addr %s132, 80
        %s134 = smul.addr %s133, 8
        %s135 = scalar_lea.vmem %s0, %s134
      $region28: #{net_forward.3} parent=23 // pred_fallthru
        _
    $region24: #{net_forward.3} parent=5 // pred_fallthru
      _
    %p136 = scmp.le.s32.totalorder 1, %s9
    %p137 = scmp.lt.s32.totalorder %s9, 3
    %p138 = pnand %p136, %p137
    %p139 = pneg %p138
    // Predicated region
    $region29: #{net_forward.3} parent=5 // pred_check
      _
    $region30: #{net_forward.3} parent=5 // pred_check_branch
      %141 = sbr.rel (%p138) target = $region32
    $region31: #{net_forward.3} parent=5 // pred_region
      %s142 = ssub.s32 %s9, 1
      %p143 = scmp.lt.s32.totalorder %s14, 1
      %s144 = scalar_select %p143, %s14, 1
      %s145 = smul.addr %s144, 80
      %s146 = smul.addr %s145, 8
      %s147 = scalar_lea.vmem %s0, %s146
      %p148 = pneg %p35
      %p149 = pneg %p32
      %p150 = pneg %p56
      %p151 = pneg %p53
      %p152 = pneg %p77
      %p153 = pneg %p74
      %p154 = pneg %p103
      %p155 = pneg %p100
      %p156 = scmp.lt.s32.totalorder %s14, 1
      %s157 = scalar_select %p156, %s14, 1
      %s158 = smul.addr %s157, 2
      %s159 = smul.addr %s158, 8
      %s160 = scalar_lea.vmem %s3, %s159
      %p161 = scmp.lt.s32.totalorder %s14, 1
      %s162 = scalar_select %p161, %s14, 1
      %s163 = smul.addr %s162, 80
      %s164 = smul.addr %s163, 8
      %s165 = scalar_lea.vmem %s0, %s164
      %p166 = scmp.lt.s32.totalorder %s14, 1
      %s167 = scalar_select %p166, %s14, 1
      %s168 = smul.addr %s167, 2
      %s169 = smul.addr %s168, 8
      %s170 = scalar_lea.vmem %s3, %s169
      %v171 = vld [vmem:[%s1] sm:$0x3f]
      %v172 = vld [vmem:[%s165] sm:$0xff]
      %v173 = vld [vmem:[%s165 + $0x8] sm:$0xff]
      %v174 = vld [vmem:[%s165 + $0x10] sm:$0xff]
      %v175 = vld [vmem:[%s165 + $0x18] sm:$0xff]
      %v176 = vld [vmem:[%s165 + $0x20] sm:$0xff]
      %v177 = vld [vmem:[%s165 + $0x28] sm:$0xff]
      %v178 = vld [vmem:[%s165 + $0x30] sm:$0xff]
      %v179 = vld [vmem:[%s165 + $0x38] sm:$0xff]
      %v180 = vld [vmem:[%s165 + $0x40] sm:$0xff]
      %v181 = vld [vmem:[%s165 + $0x48] sm:$0xff]
      %v182 = vld [vmem:[%s165 + $0x50] sm:$0xff]
      %v183 = vld [vmem:[%s165 + $0x58] sm:$0xff]
      %v184 = vld [vmem:[%s165 + $0x60] sm:$0xff]
      %v185 = vld [vmem:[%s165 + $0x68] sm:$0xff]
      %v186 = vld [vmem:[%s165 + $0x70] sm:$0xff]
      %v187 = vld [vmem:[%s165 + $0x78] sm:$0xff]
      %v188 = vld [vmem:[%s165 + $0x80] sm:$0xff]
      %v189 = vld [vmem:[%s165 + $0x88] sm:$0xff]
      %v190 = vld [vmem:[%s165 + $0x90] sm:$0x7]
      %v191 = vld [vmem:[%s165 + $0x98] sm:$0x7]
      %vm192 = vcmask 613376
      %v194 = vsel %vm192, %v171, 0
      %vm196 = vcmask 1042432
      %v198 = vsel %vm196, %v190, 0
      %v201 = vsel %vm196, %v191, 0
      %203 = vmatpush.msra.mxu0 0.0
      %204 = vmatpush.msra.mxu0 0.0
      %205 = vmatpush.msra.mxu0 0.0
      %206 = vmatpush.msra.mxu0 0.0
      %207 = vmatpush.msra.mxu0 0.0
      %208 = vmatpush.msra.mxu0 0.0
      %209 = vmatpush.msra.mxu0 %v198
      %210 = vmatpush.msra.mxu0 %v188
      %211 = vmatpush.msra.mxu0 %v186
      %212 = vmatpush.msra.mxu0 %v184
      %213 = vmatpush.msra.mxu0 %v182
      %214 = vmatpush.msra.mxu0 %v180
      %215 = vmatpush.msra.mxu0 %v178
      %216 = vmatpush.msra.mxu0 %v176
      %217 = vmatpush.msra.mxu0 %v174
      %218 = vmatpush.msra.mxu0 %v172
      %219 = vmatmul.f32.gmra.mxu0 %v194
      %v220 = vpop.f32.mrf.mxu0
      %v221 = vadd.f32 0.0, %v220
      %222 = vdwg.mxu0
      %223 = vmatpush.msra.mxu0 0.0
      %224 = vmatpush.msra.mxu0 0.0
      %225 = vmatpush.msra.mxu0 0.0
      %226 = vmatpush.msra.mxu0 0.0
      %227 = vmatpush.msra.mxu0 0.0
      %228 = vmatpush.msra.mxu0 0.0
      %229 = vmatpush.msra.mxu0 %v201
      %230 = vmatpush.msra.mxu0 %v189
      %231 = vmatpush.msra.mxu0 %v187
      %232 = vmatpush.msra.mxu0 %v185
      %233 = vmatpush.msra.mxu0 %v183
      %234 = vmatpush.msra.mxu0 %v181
      %235 = vmatpush.msra.mxu0 %v179
      %236 = vmatpush.msra.mxu0 %v177
      %237 = vmatpush.msra.mxu0 %v175
      %238 = vmatpush.msra.mxu0 %v173
      %239 = vmatmul.f32.gmra.mxu0 %v194
      %v240 = vpop.f32.mrf.mxu0
      %v241 = vadd.f32 0.0, %v240
      %242 = vdwg.mxu0
      %s243 = scalar_lea.vmem %s165, 160
      %v244 = vld [vmem:[%s243] sm:$0xff]
      %v245 = vld [vmem:[%s243 + $0x8] sm:$0xff]
      %v246 = vld [vmem:[%s243 + $0x10] sm:$0xff]
      %v247 = vld [vmem:[%s243 + $0x18] sm:$0xff]
      %v248 = vld [vmem:[%s243 + $0x20] sm:$0xff]
      %v249 = vld [vmem:[%s243 + $0x28] sm:$0xff]
      %v250 = vld [vmem:[%s243 + $0x30] sm:$0xff]
      %v251 = vld [vmem:[%s243 + $0x38] sm:$0xff]
      %v252 = vld [vmem:[%s243 + $0x40] sm:$0xff]
      %v253 = vld [vmem:[%s243 + $0x48] sm:$0xff]
      %v254 = vld [vmem:[%s243 + $0x50] sm:$0xff]
      %v255 = vld [vmem:[%s243 + $0x58] sm:$0xff]
      %v256 = vld [vmem:[%s243 + $0x60] sm:$0xff]
      %v257 = vld [vmem:[%s243 + $0x68] sm:$0xff]
      %v258 = vld [vmem:[%s243 + $0x70] sm:$0xff]
      %v259 = vld [vmem:[%s243 + $0x78] sm:$0xff]
      %v260 = vld [vmem:[%s243 + $0x80] sm:$0xff]
      %v261 = vld [vmem:[%s243 + $0x88] sm:$0xff]
      %v262 = vld [vmem:[%s243 + $0x90] sm:$0x7]
      %v263 = vld [vmem:[%s243 + $0x98] sm:$0x7]
      %v265 = vsel %vm196, %v262, 0
      %v268 = vsel %vm196, %v263, 0
      %270 = vmatpush.msra.mxu0 0.0
      %271 = vmatpush.msra.mxu0 0.0
      %272 = vmatpush.msra.mxu0 0.0
      %273 = vmatpush.msra.mxu0 0.0
      %274 = vmatpush.msra.mxu0 0.0
      %275 = vmatpush.msra.mxu0 0.0
      %276 = vmatpush.msra.mxu0 %v265
      %277 = vmatpush.msra.mxu0 %v260
      %278 = vmatpush.msra.mxu0 %v258
      %279 = vmatpush.msra.mxu0 %v256
      %280 = vmatpush.msra.mxu0 %v254
      %281 = vmatpush.msra.mxu0 %v252
      %282 = vmatpush.msra.mxu0 %v250
      %283 = vmatpush.msra.mxu0 %v248
      %284 = vmatpush.msra.mxu0 %v246
      %285 = vmatpush.msra.mxu0 %v244
      %286 = vmatmul.f32.gmra.mxu0 %v194
      %v287 = vpop.f32.mrf.mxu0
      %v288 = vadd.f32 0.0, %v287
      %289 = vdwg.mxu0
      %290 = vmatpush.msra.mxu0 0.0
      %291 = vmatpush.msra.mxu0 0.0
      %292 = vmatpush.msra.mxu0 0.0
      %293 = vmatpush.msra.mxu0 0.0
      %294 = vmatpush.msra.mxu0 0.0
      %295 = vmatpush.msra.mxu0 0.0
      %296 = vmatpush.msra.mxu0 %v268
      %297 = vmatpush.msra.mxu0 %v261
      %298 = vmatpush.msra.mxu0 %v259
      %299 = vmatpush.msra.mxu0 %v257
      %300 = vmatpush.msra.mxu0 %v255
      %301 = vmatpush.msra.mxu0 %v253
      %302 = vmatpush.msra.mxu0 %v251
      %303 = vmatpush.msra.mxu0 %v249
      %304 = vmatpush.msra.mxu0 %v247
      %305 = vmatpush.msra.mxu0 %v245
      %306 = vmatmul.f32.gmra.mxu0 %v194
      %v307 = vpop.f32.mrf.mxu0
      %v308 = vadd.f32 0.0, %v307
      %309 = vdwg.mxu0
      %v310 = vmax.f32 %v221, %v288
      %v311 = vmax.f32 %v241, %v308
      %s312 = scalar_lea.vmem %s165, 320
      %v313 = vld [vmem:[%s312] sm:$0xff]
      %v314 = vld [vmem:[%s312 + $0x8] sm:$0xff]
      %v315 = vld [vmem:[%s312 + $0x10] sm:$0xff]
      %v316 = vld [vmem:[%s312 + $0x18] sm:$0xff]
      %v317 = vld [vmem:[%s312 + $0x20] sm:$0xff]
      %v318 = vld [vmem:[%s312 + $0x28] sm:$0xff]
      %v319 = vld [vmem:[%s312 + $0x30] sm:$0xff]
      %v320 = vld [vmem:[%s312 + $0x38] sm:$0xff]
      %v321 = vld [vmem:[%s312 + $0x40] sm:$0xff]
      %v322 = vld [vmem:[%s312 + $0x48] sm:$0xff]
      %v323 = vld [vmem:[%s312 + $0x50] sm:$0xff]
      %v324 = vld [vmem:[%s312 + $0x58] sm:$0xff]
      %v325 = vld [vmem:[%s312 + $0x60] sm:$0xff]
      %v326 = vld [vmem:[%s312 + $0x68] sm:$0xff]
      %v327 = vld [vmem:[%s312 + $0x70] sm:$0xff]
      %v328 = vld [vmem:[%s312 + $0x78] sm:$0xff]
      %v329 = vld [vmem:[%s312 + $0x80] sm:$0xff]
      %v330 = vld [vmem:[%s312 + $0x88] sm:$0xff]
      %v331 = vld [vmem:[%s312 + $0x90] sm:$0x7]
      %v332 = vld [vmem:[%s312 + $0x98] sm:$0x7]
      %v334 = vsel %vm196, %v331, 0
      %v337 = vsel %vm196, %v332, 0
      %339 = vmatpush.msra.mxu0 0.0
      %340 = vmatpush.msra.mxu0 0.0
      %341 = vmatpush.msra.mxu0 0.0
      %342 = vmatpush.msra.mxu0 0.0
      %343 = vmatpush.msra.mxu0 0.0
      %344 = vmatpush.msra.mxu0 0.0
      %345 = vmatpush.msra.mxu0 %v334
      %346 = vmatpush.msra.mxu0 %v329
      %347 = vmatpush.msra.mxu0 %v327
      %348 = vmatpush.msra.mxu0 %v325
      %349 = vmatpush.msra.mxu0 %v323
      %350 = vmatpush.msra.mxu0 %v321
      %351 = vmatpush.msra.mxu0 %v319
      %352 = vmatpush.msra.mxu0 %v317
      %353 = vmatpush.msra.mxu0 %v315
      %354 = vmatpush.msra.mxu0 %v313
      %355 = vmatmul.f32.gmra.mxu0 %v194
      %v356 = vpop.f32.mrf.mxu0
      %v357 = vadd.f32 0.0, %v356
      %358 = vdwg.mxu0
      %359 = vmatpush.msra.mxu0 0.0
      %360 = vmatpush.msra.mxu0 0.0
      %361 = vmatpush.msra.mxu0 0.0
      %362 = vmatpush.msra.mxu0 0.0
      %363 = vmatpush.msra.mxu0 0.0
      %364 = vmatpush.msra.mxu0 0.0
      %365 = vmatpush.msra.mxu0 %v337
      %366 = vmatpush.msra.mxu0 %v330
      %367 = vmatpush.msra.mxu0 %v328
      %368 = vmatpush.msra.mxu0 %v326
      %369 = vmatpush.msra.mxu0 %v324
      %370 = vmatpush.msra.mxu0 %v322
      %371 = vmatpush.msra.mxu0 %v320
      %372 = vmatpush.msra.mxu0 %v318
      %373 = vmatpush.msra.mxu0 %v316
      %374 = vmatpush.msra.mxu0 %v314
      %375 = vmatmul.f32.gmra.mxu0 %v194
      %v376 = vpop.f32.mrf.mxu0
      %v377 = vadd.f32 0.0, %v376
      %378 = vdwg.mxu0
      %v379 = vmax.f32 %v310, %v357
      %v380 = vmax.f32 %v311, %v377
      %s381 = scalar_lea.vmem %s165, 480
      %v382 = vld [vmem:[%s381] sm:$0xff]
      %v383 = vld [vmem:[%s381 + $0x8] sm:$0xff]
      %v384 = vld [vmem:[%s381 + $0x10] sm:$0xff]
      %v385 = vld [vmem:[%s381 + $0x18] sm:$0xff]
      %v386 = vld [vmem:[%s381 + $0x20] sm:$0xff]
      %v387 = vld [vmem:[%s381 + $0x28] sm:$0xff]
      %v388 = vld [vmem:[%s381 + $0x30] sm:$0xff]
      %v389 = vld [vmem:[%s381 + $0x38] sm:$0xff]
      %v390 = vld [vmem:[%s381 + $0x40] sm:$0xff]
      %v391 = vld [vmem:[%s381 + $0x48] sm:$0xff]
      %v392 = vld [vmem:[%s381 + $0x50] sm:$0xff]
      %v393 = vld [vmem:[%s381 + $0x58] sm:$0xff]
      %v394 = vld [vmem:[%s381 + $0x60] sm:$0xff]
      %v395 = vld [vmem:[%s381 + $0x68] sm:$0xff]
      %v396 = vld [vmem:[%s381 + $0x70] sm:$0xff]
      %v397 = vld [vmem:[%s381 + $0x78] sm:$0xff]
      %v398 = vld [vmem:[%s381 + $0x80] sm:$0xff]
      %v399 = vld [vmem:[%s381 + $0x88] sm:$0xff]
      %v400 = vld [vmem:[%s381 + $0x90] sm:$0x7]
      %v401 = vld [vmem:[%s381 + $0x98] sm:$0x7]
      %v403 = vsel %vm196, %v400, 0
      %v406 = vsel %vm196, %v401, 0
      %408 = vmatpush.msra.mxu0 0.0
      %409 = vmatpush.msra.mxu0 0.0
      %410 = vmatpush.msra.mxu0 0.0
      %411 = vmatpush.msra.mxu0 0.0
      %412 = vmatpush.msra.mxu0 0.0
      %413 = vmatpush.msra.mxu0 0.0
      %414 = vmatpush.msra.mxu0 %v403
      %415 = vmatpush.msra.mxu0 %v398
      %416 = vmatpush.msra.mxu0 %v396
      %417 = vmatpush.msra.mxu0 %v394
      %418 = vmatpush.msra.mxu0 %v392
      %419 = vmatpush.msra.mxu0 %v390
      %420 = vmatpush.msra.mxu0 %v388
      %421 = vmatpush.msra.mxu0 %v386
      %422 = vmatpush.msra.mxu0 %v384
      %423 = vmatpush.msra.mxu0 %v382
      %424 = vmatmul.f32.gmra.mxu0 %v194
      %v425 = vpop.f32.mrf.mxu0
      %v426 = vadd.f32 0.0, %v425
      %427 = vdwg.mxu0
      %428 = vmatpush.msra.mxu0 0.0
      %429 = vmatpush.msra.mxu0 0.0
      %430 = vmatpush.msra.mxu0 0.0
      %431 = vmatpush.msra.mxu0 0.0
      %432 = vmatpush.msra.mxu0 0.0
      %433 = vmatpush.msra.mxu0 0.0
      %434 = vmatpush.msra.mxu0 %v406
      %435 = vmatpush.msra.mxu0 %v399
      %436 = vmatpush.msra.mxu0 %v397
      %437 = vmatpush.msra.mxu0 %v395
      %438 = vmatpush.msra.mxu0 %v393
      %439 = vmatpush.msra.mxu0 %v391
      %440 = vmatpush.msra.mxu0 %v389
      %441 = vmatpush.msra.mxu0 %v387
      %442 = vmatpush.msra.mxu0 %v385
      %443 = vmatpush.msra.mxu0 %v383
      %444 = vmatmul.f32.gmra.mxu0 %v194
      %v445 = vpop.f32.mrf.mxu0
      %v446 = vadd.f32 0.0, %v445
      %447 = vdwg.mxu0
      %v448 = vmax.f32 %v379, %v426
      %v449 = vmax.f32 %v380, %v446
      %v450 = vld [vmem:[%s2] sm:$0x3f]
      %452 = vset.pattern.permute.xlu0 0
      %453 = vperm.xlu0 %452, %v450
      %v454 = vpop.permute.xlu0 %453
      %v456 = vadd.f32 %v448, %v454
      %v457 = vadd.f32 %v449, %v454
      %v458 = vmax.f32 %v456, 0.0
      %v459 = vmax.f32 %v457, 0.0
      %460 = vst [vmem:[%s170] sm:$0x3f] %v458
      %vm461 = vcmask 553984
      %462 = vst.msk [vmem:[%s170 + $0x8] sm:$0x3f] %vm461, %v459
      %p463 = scmp.lt.s32.totalorder %s14, 1
      %s464 = scalar_select %p463, %s14, 1
      %s465 = smul.addr %s464, 2
      %s466 = smul.addr %s465, 8
      %s467 = scalar_lea.vmem %s3, %s466
      // Predicated region
      $region33: #{net_forward.3} parent=31 // pred_check
        %p468 = pneg %p100
      $region34: #{net_forward.3} parent=31 // pred_check_branch
        %470 = sbr.rel (%p468) target = $region36
      $region35: #{net_forward.3} parent=31 // pred_region
        _
      $region36: #{net_forward.3} parent=31 // pred_fallthru
        _
    $region32: #{net_forward.3} parent=5 // pred_fallthru
      _
    %p471 = scmp.le.s32.totalorder 2, %s9
    // Predicated region
    $region37: #{net_forward.3} parent=5 // pred_check
      %p472 = pneg %p471
    $region38: #{net_forward.3} parent=5 // pred_check_branch
      %474 = sbr.rel (%p472) target = $region40
    $region39: #{net_forward.3} parent=5 // pred_region
      %s475 = ssub.s32 %s9, 2
      // Predicated region
      $region41: #{net_forward.3} parent=39 // pred_check
        %p476 = pneg %p106
      $region42: #{net_forward.3} parent=39 // pred_check_branch
        %478 = sbr.rel (%p476) target = $region44
      $region43: #{net_forward.3} parent=39 // pred_region
        %p479 = scmp.lt.s32.totalorder %s15, 1
        %s480 = scalar_select %p479, %s15, 1
        %s481 = smul.addr %s480, 2
        %s482 = smul.addr %s481, 8
        %s483 = scalar_lea.vmem %s3, %s482
      $region44: #{net_forward.3} parent=39 // pred_fallthru
        _
    $region40: #{net_forward.3} parent=5 // pred_fallthru
      _
  $region6: #{net_forward.3} parent=0 // loop_footer
    %s13 = sadd.s32 1, %s9
  $region7: #{net_forward.3} parent=0 // loop_footer_branch
    %8 = sbr.rel target = $region3
  $region8: #{net_forward.3} parent=0 // loop_exit
    _

// kernel: net_forward.4
$region0: #{net_forward.4}
  #allocation0 [shape = 'u32[]', space=smem, size = 0x4, offset = 0x4, fixed_abs, tag = 'smem constant byte address 0x4 - core index']
  #allocation1 [shape = 'u32[72,128]{1,0:T(1,128)}', space=vmem, size = 0x9000, scoped, tag = 'internal scratch']
  %s0 = inlined_call_operand.vmem [shape: f32[2,4,150,25], index: 0, kind: input, shape index: {}]
  %s1 = inlined_call_operand.vmem [shape: f32[16,150], index: 1, kind: input, shape index: {}]
  %s2 = inlined_call_operand.vmem [shape: f32[16,1], index: 2, kind: input, shape index: {}]
  %s3 = inlined_call_operand.vmem [shape: f32[2,16,25], index: 3, kind: output, shape index: {}]
  %s4 = sld [smem:[#allocation0]]
  $region45: #{net_forward.4} parent=0
    _
  %s6 = ssub.s32 1, %s4
  %s7 = scalar_select 0, %s6, %s4
  loop: start=0, step=1, limit=4
  $region2: #{net_forward.4} parent=0 // loop_pre_header
    _
  $region3: #{net_forward.4} parent=0 // loop_header
    %s9 = sphi 0, %s13
    %p10 = scmp.ge.s32.totalorder %s9, 4
    %s19 = sphi 0, %s21
    %s22 = sphi 0, %s19
    %s23 = sphi 0, %s22
    %s39 = sphi 0, %s23
    %s43 = sphi 0, %s43
    %s45 = sphi 0, %s43
    %s46 = sphi 0, %s45
    %s60 = sphi 0, %s46
    %s64 = sphi 0, %s64
    %s66 = sphi 0, %s64
    %s67 = sphi 0, %s66
    %s81 = sphi 0, %s67
    %s87 = sphi 0, %s89
    %s90 = sphi 0, %s87
    %s91 = sphi 0, %s90
    %s107 = sphi 0, %s91
  $region4: #{net_forward.4} parent=0 // loop_header_branch
    %12 = sbr.rel (%p10) target = $region8
  $region5: #{net_forward.4} parent=0 // loop_body
    %s14 = ssub.s32 %s9, 1
    %s15 = ssub.s32 %s9, 2
    %s16 = sadd.s32 %s9, 1
    %s17 = ssub.s32 %s9, %s16
    %p18 = scmp.eq.s32.totalorder %s17, 0
    %s20 = sadd.s32 %s19, 1
    %s21 = scalar_select %p18, %s19, %s20
    %p24 = pneg %p18
    %p25 = scmp.eq.s32.totalorder %s9, 1
    %p26 = por %p24, %p25
    %p27 = scmp.ne.s32.totalorder %s19, %s22
    %p28 = scmp.eq.s32.totalorder %s9, 0
    %p29 = por %p27, %p28
    %p30 = scmp.ne.s32.totalorder %s19, %s22
    %p31 = scmp.eq.s32.totalorder %s14, 1
    %p32 = por %p30, %p31
    %p33 = scmp.ne.s32.totalorder %s22, %s23
    %p34 = scmp.eq.s32.totalorder %s14, 0
    %p35 = por %p33, %p34
    %p36 = scmp.ne.s32.totalorder %s22, %s23
    %p37 = scmp.eq.s32.totalorder %s15, 1
    %p38 = por %p36, %p37
    %p40 = scmp.ne.s32.totalorder %s23, %s39
    %p41 = scmp.eq.s32.totalorder %s15, 0
    %p42 = por %p40, %p41
    %s44 = sadd.s32 %s43, 1
    %p47 = scmp.eq.s32.totalorder %s9, 1
    %p48 = scmp.ne.s32.totalorder %s43, %s45
    %p49 = scmp.eq.s32.totalorder %s9, 0
    %p50 = por %p48, %p49
    %p51 = scmp.ne.s32.totalorder %s43, %s45
    %p52 = scmp.eq.s32.totalorder %s14, 1
    %p53 = por %p51, %p52
    %p54 = scmp.ne.s32.totalorder %s45, %s46
    %p55 = scmp.eq.s32.totalorder %s14, 0
    %p56 = por %p54, %p55
    %p57 = scmp.ne.s32.totalorder %s45, %s46
    %p58 = scmp.eq.s32.totalorder %s15, 1
    %p59 = por %p57, %p58
    %p61 = scmp.ne.s32.totalorder %s46, %s60
    %p62 = scmp.eq.s32.totalorder %s15, 0
    %p63 = por %p61, %p62
    %s65 = sadd.s32 %s64, 1
    %p68 = scmp.eq.s32.totalorder %s9, 1
    %p69 = scmp.ne.s32.totalorder %s64, %s66
    %p70 = scmp.eq.s32.totalorder %s9, 0
    %p71 = por %p69, %p70
    %p72 = scmp.ne.s32.totalorder %s64, %s66
    %p73 = scmp.eq.s32.totalorder %s14, 1
    %p74 = por %p72, %p73
    %p75 = scmp.ne.s32.totalorder %s66, %s67
    %p76 = scmp.eq.s32.totalorder %s14, 0
    %p77 = por %p75, %p76
    %p78 = scmp.ne.s32.totalorder %s66, %s67
    %p79 = scmp.eq.s32.totalorder %s15, 1
    %p80 = por %p78, %p79
    %p82 = scmp.ne.s32.totalorder %s67, %s81
    %p83 = scmp.eq.s32.totalorder %s15, 0
    %p84 = por %p82, %p83
    %s85 = ssub.s32 %s9, %s16
    %p86 = scmp.eq.s32.totalorder %s85, 0
    %s88 = sadd.s32 %s87, 1
    %s89 = scalar_select %p86, %s87, %s88
    %p92 = pneg %p86
    %p93 = scmp.eq.s32.totalorder %s9, 1
    %p94 = por %p92, %p93
    %p95 = scmp.ne.s32.totalorder %s87, %s90
    %p96 = scmp.eq.s32.totalorder %s9, 0
    %p97 = por %p95, %p96
    %p98 = scmp.ne.s32.totalorder %s87, %s90
    %p99 = scmp.eq.s32.totalorder %s14, 1
    %p100 = por %p98, %p99
    %p101 = scmp.ne.s32.totalorder %s90, %s91
    %p102 = scmp.eq.s32.totalorder %s14, 0
    %p103 = por %p101, %p102
    %p104 = scmp.ne.s32.totalorder %s90, %s91
    %p105 = scmp.eq.s32.totalorder %s15, 1
    %p106 = por %p104, %p105
    %p108 = scmp.ne.s32.totalorder %s91, %s107
    %p109 = scmp.eq.s32.totalorder %s15, 0
    %p110 = por %p108, %p109
    %p111 = scmp.le.s32.totalorder 1, %s9
    %p112 = scmp.lt.s32.totalorder %s9, 3
    %p113 = pnand %p111, %p112
    %p114 = pneg %p113
    // Predicated region
    $region9: #{net_forward.4} parent=5 // pred_check
      _
    $region10: #{net_forward.4} parent=5 // pred_check_branch
      %116 = sbr.rel (%p113) target = $region12
    $region11: #{net_forward.4} parent=5 // pred_region
      %s117 = ssub.s32 %s9, 1
      // Predicated region
      $region13: #{net_forward.4} parent=11 // pred_check
        %p118 = pneg %p56
      $region14: #{net_forward.4} parent=11 // pred_check_branch
        %120 = sbr.rel (%p118) target = $region16
      $region15: #{net_forward.4} parent=11 // pred_region
        _
      $region16: #{net_forward.4} parent=11 // pred_fallthru
        _
      // Predicated region
      $region17: #{net_forward.4} parent=11 // pred_check
        %p121 = pneg %p77
      $region18: #{net_forward.4} parent=11 // pred_check_branch
        %123 = sbr.rel (%p121) target = $region20
      $region19: #{net_forward.4} parent=11 // pred_region
        _
      $region20: #{net_forward.4} parent=11 // pred_fallthru
        _
    $region12: #{net_forward.4} parent=5 // pred_fallthru
      _
    %p124 = scmp.lt.s32.totalorder %s9, 2
    // Predicated region
    $region21: #{net_forward.4} parent=5 // pred_check
      %p125 = pneg %p124
    $region22: #{net_forward.4} parent=5 // pred_check_branch
      %127 = sbr.rel (%p125) target = $region24
    $region23: #{net_forward.4} parent=5 // pred_region
      // Predicated region
      $region25: #{net_forward.4} parent=23 // pred_check
        %p128 = pneg %p29
      $region26: #{net_forward.4} parent=23 // pred_check_branch
        %130 = sbr.rel (%p128) target = $region28
      $region27: #{net_forward.4} parent=23 // pred_region
        %p131 = scmp.lt.s32.totalorder %s9, 1
        %s132 = scalar_select %p131, %s9, 1
        %s133 = smul.addr %s132, 76
        %s134 = smul.addr %s133, 8
        %s135 = scalar_lea.vmem %s0, %s134
      $region28: #{net_forward.4} parent=23 // pred_fallthru
        _
    $region24: #{net_forward.4} parent=5 // pred_fallthru
      _
    %p136 = scmp.le.s32.totalorder 1, %s9
    %p137 = scmp.lt.s32.totalorder %s9, 3
    %p138 = pnand %p136, %p137
    %p139 = pneg %p138
    // Predicated region
    $region29: #{net_forward.4} parent=5 // pred_check
      _
    $region30: #{net_forward.4} parent=5 // pred_check_branch
      %141 = sbr.rel (%p138) target = $region32
    $region31: #{net_forward.4} parent=5 // pred_region
      %s142 = ssub.s32 %s9, 1
      %p143 = scmp.lt.s32.totalorder %s14, 1
      %s144 = scalar_select %p143, %s14, 1
      %s145 = smul.addr %s144, 76
      %s146 = smul.addr %s145, 8
      %s147 = scalar_lea.vmem %s0, %s146
      %p148 = pneg %p35
      %p149 = pneg %p32
      %p150 = pneg %p56
      %p151 = pneg %p53
      %p152 = pneg %p77
      %p153 = pneg %p74
      %p154 = pneg %p103
      %p155 = pneg %p100
      %p156 = scmp.lt.s32.totalorder %s14, 1
      %s157 = scalar_select %p156, %s14, 1
      %s158 = smul.addr %s157, 2
      %s159 = smul.addr %s158, 8
      %s160 = scalar_lea.vmem %s3, %s159
      %p161 = scmp.lt.s32.totalorder %s14, 1
      %s162 = scalar_select %p161, %s14, 1
      %s163 = smul.addr %s162, 76
      %s164 = smul.addr %s163, 8
      %s165 = scalar_lea.vmem %s0, %s164
      %p166 = scmp.lt.s32.totalorder %s14, 1
      %s167 = scalar_select %p166, %s14, 1
      %s168 = smul.addr %s167, 2
      %s169 = smul.addr %s168, 8
      %s170 = scalar_lea.vmem %s3, %s169
      %v171 = vld [vmem:[%s1] sm:$0xff]
      %v172 = vld [vmem:[%s1 + $0x8] sm:$0xff]
      %v173 = vld [vmem:[%s1 + $0x10] sm:$0xff]
      %v174 = vld [vmem:[%s1 + $0x18] sm:$0xff]
      %v175 = vld [vmem:[%s165] sm:$0xff]
      %v176 = vld [vmem:[%s165 + $0x8] sm:$0xff]
      %v177 = vld [vmem:[%s165 + $0x10] sm:$0xff]
      %v178 = vld [vmem:[%s165 + $0x18] sm:$0xff]
      %v179 = vld [vmem:[%s165 + $0x20] sm:$0xff]
      %v180 = vld [vmem:[%s165 + $0x28] sm:$0xff]
      %v181 = vld [vmem:[%s165 + $0x30] sm:$0xff]
      %v182 = vld [vmem:[%s165 + $0x38] sm:$0xff]
      %v183 = vld [vmem:[%s165 + $0x40] sm:$0xff]
      %v184 = vld [vmem:[%s165 + $0x48] sm:$0xff]
      %v185 = vld [vmem:[%s165 + $0x50] sm:$0xff]
      %v186 = vld [vmem:[%s165 + $0x58] sm:$0xff]
      %v187 = vld [vmem:[%s165 + $0x60] sm:$0xff]
      %v188 = vld [vmem:[%s165 + $0x68] sm:$0xff]
      %v189 = vld [vmem:[%s165 + $0x70] sm:$0xff]
      %v190 = vld [vmem:[%s165 + $0x78] sm:$0xff]
      %v191 = vld [vmem:[%s165 + $0x80] sm:$0xff]
      %v192 = vld [vmem:[%s165 + $0x88] sm:$0xff]
      %v193 = vld [vmem:[%s165 + $0x90] sm:$0x3f]
      %vm194 = vcmask 179200
      %v196 = vsel %vm194, %v172, 0
      %v199 = vsel %vm194, %v174, 0
      %vm201 = vcmask 1045504
      %v203 = vsel %vm201, %v193, 0
      %205 = vmatpush.msra.mxu0 %v190
      %206 = vmatpush.msra.mxu0 %v189
      %207 = vmatpush.msra.mxu0 %v188
      %208 = vmatpush.msra.mxu0 %v187
      %209 = vmatpush.msra.mxu0 %v186
      %210 = vmatpush.msra.mxu0 %v185
      %211 = vmatpush.msra.mxu0 %v184
      %212 = vmatpush.msra.mxu0 %v183
      %213 = vmatpush.msra.mxu0 %v182
      %214 = vmatpush.msra.mxu0 %v181
      %215 = vmatpush.msra.mxu0 %v180
      %216 = vmatpush.msra.mxu0 %v179
      %217 = vmatpush.msra.mxu0 %v178
      %218 = vmatpush.msra.mxu0 %v177
      %219 = vmatpush.msra.mxu0 %v176
      %220 = vmatpush.msra.mxu0 %v175
      %221 = vmatmul.f32.gmra.mxu0 %v171
      %v222 = vpop.f32.mrf.mxu0
      %v223 = vadd.f32 0.0, %v222
      %224 = vmatmul.f32.gmra.mxu0 %v173
      %v225 = vpop.f32.mrf.mxu0
      %v226 = vadd.f32 0.0, %v225
      %227 = vdwg.mxu0
      %228 = vmatpush.msra.mxu0 0.0
      %229 = vmatpush.msra.mxu0 0.0
      %230 = vmatpush.msra.mxu0 0.0
      %231 = vmatpush.msra.mxu0 0.0
      %232 = vmatpush.msra.mxu0 0.0
      %233 = vmatpush.msra.mxu0 0.0
      %234 = vmatpush.msra.mxu0 0.0
      %235 = vmatpush.msra.mxu0 0.0
      %236 = vmatpush.msra.mxu0 0.0
      %237 = vmatpush.msra.mxu0 0.0
      %238 = vmatpush.msra.mxu0 0.0
      %239 = vmatpush.msra.mxu0 0.0
      %240 = vmatpush.msra.mxu0 0.0
      %241 = vmatpush.msra.mxu0 %v203
      %242 = vmatpush.msra.mxu0 %v192
      %243 = vmatpush.msra.mxu0 %v191
      %244 = vmatmul.f32.gmra.mxu0 %v196
      %v245 = vpop.f32.mrf.mxu0
      %v246 = vadd.f32 %v223, %v245
      %247 = vmatmul.f32.gmra.mxu0 %v199
      %v248 = vpop.f32.mrf.mxu0
      %v249 = vadd.f32 %v226, %v248
      %250 = vdwg.mxu0
      %s251 = scalar_lea.vmem %s165, 152
      %v252 = vld [vmem:[%s251] sm:$0xff]
      %v253 = vld [vmem:[%s251 + $0x8] sm:$0xff]
      %v254 = vld [vmem:[%s251 + $0x10] sm:$0xff]
      %v255 = vld [vmem:[%s251 + $0x18] sm:$0xff]
      %v256 = vld [vmem:[%s251 + $0x20] sm:$0xff]
      %v257 = vld [vmem:[%s251 + $0x28] sm:$0xff]
      %v258 = vld [vmem:[%s251 + $0x30] sm:$0xff]
      %v259 = vld [vmem:[%s251 + $0x38] sm:$0xff]
      %v260 = vld [vmem:[%s251 + $0x40] sm:$0xff]
      %v261 = vld [vmem:[%s251 + $0x48] sm:$0xff]
      %v262 = vld [vmem:[%s251 + $0x50] sm:$0xff]
      %v263 = vld [vmem:[%s251 + $0x58] sm:$0xff]
      %v264 = vld [vmem:[%s251 + $0x60] sm:$0xff]
      %v265 = vld [vmem:[%s251 + $0x68] sm:$0xff]
      %v266 = vld [vmem:[%s251 + $0x70] sm:$0xff]
      %v267 = vld [vmem:[%s251 + $0x78] sm:$0xff]
      %v268 = vld [vmem:[%s251 + $0x80] sm:$0xff]
      %v269 = vld [vmem:[%s251 + $0x88] sm:$0xff]
      %v270 = vld [vmem:[%s251 + $0x90] sm:$0x3f]
      %v272 = vsel %vm201, %v270, 0
      %274 = vmatpush.msra.mxu0 %v267
      %275 = vmatpush.msra.mxu0 %v266
      %276 = vmatpush.msra.mxu0 %v265
      %277 = vmatpush.msra.mxu0 %v264
      %278 = vmatpush.msra.mxu0 %v263
      %279 = vmatpush.msra.mxu0 %v262
      %280 = vmatpush.msra.mxu0 %v261
      %281 = vmatpush.msra.mxu0 %v260
      %282 = vmatpush.msra.mxu0 %v259
      %283 = vmatpush.msra.mxu0 %v258
      %284 = vmatpush.msra.mxu0 %v257
      %285 = vmatpush.msra.mxu0 %v256
      %286 = vmatpush.msra.mxu0 %v255
      %287 = vmatpush.msra.mxu0 %v254
      %288 = vmatpush.msra.mxu0 %v253
      %289 = vmatpush.msra.mxu0 %v252
      %290 = vmatmul.f32.gmra.mxu0 %v171
      %v291 = vpop.f32.mrf.mxu0
      %v292 = vadd.f32 0.0, %v291
      %293 = vmatmul.f32.gmra.mxu0 %v173
      %v294 = vpop.f32.mrf.mxu0
      %v295 = vadd.f32 0.0, %v294
      %296 = vdwg.mxu0
      %297 = vmatpush.msra.mxu0 0.0
      %298 = vmatpush.msra.mxu0 0.0
      %299 = vmatpush.msra.mxu0 0.0
      %300 = vmatpush.msra.mxu0 0.0
      %301 = vmatpush.msra.mxu0 0.0
      %302 = vmatpush.msra.mxu0 0.0
      %303 = vmatpush.msra.mxu0 0.0
      %304 = vmatpush.msra.mxu0 0.0
      %305 = vmatpush.msra.mxu0 0.0
      %306 = vmatpush.msra.mxu0 0.0
      %307 = vmatpush.msra.mxu0 0.0
      %308 = vmatpush.msra.mxu0 0.0
      %309 = vmatpush.msra.mxu0 0.0
      %310 = vmatpush.msra.mxu0 %v272
      %311 = vmatpush.msra.mxu0 %v269
      %312 = vmatpush.msra.mxu0 %v268
      %313 = vmatmul.f32.gmra.mxu0 %v196
      %v314 = vpop.f32.mrf.mxu0
      %v315 = vadd.f32 %v292, %v314
      %316 = vmatmul.f32.gmra.mxu0 %v199
      %v317 = vpop.f32.mrf.mxu0
      %v318 = vadd.f32 %v295, %v317
      %319 = vdwg.mxu0
      %v320 = vmax.f32 %v246, %v315
      %v321 = vmax.f32 %v249, %v318
      %s322 = scalar_lea.vmem %s165, 304
      %v323 = vld [vmem:[%s322] sm:$0xff]
      %v324 = vld [vmem:[%s322 + $0x8] sm:$0xff]
      %v325 = vld [vmem:[%s322 + $0x10] sm:$0xff]
      %v326 = vld [vmem:[%s322 + $0x18] sm:$0xff]
      %v327 = vld [vmem:[%s322 + $0x20] sm:$0xff]
      %v328 = vld [vmem:[%s322 + $0x28] sm:$0xff]
      %v329 = vld [vmem:[%s322 + $0x30] sm:$0xff]
      %v330 = vld [vmem:[%s322 + $0x38] sm:$0xff]
      %v331 = vld [vmem:[%s322 + $0x40] sm:$0xff]
      %v332 = vld [vmem:[%s322 + $0x48] sm:$0xff]
      %v333 = vld [vmem:[%s322 + $0x50] sm:$0xff]
      %v334 = vld [vmem:[%s322 + $0x58] sm:$0xff]
      %v335 = vld [vmem:[%s322 + $0x60] sm:$0xff]
      %v336 = vld [vmem:[%s322 + $0x68] sm:$0xff]
      %v337 = vld [vmem:[%s322 + $0x70] sm:$0xff]
      %v338 = vld [vmem:[%s322 + $0x78] sm:$0xff]
      %v339 = vld [vmem:[%s322 + $0x80] sm:$0xff]
      %v340 = vld [vmem:[%s322 + $0x88] sm:$0xff]
      %v341 = vld [vmem:[%s322 + $0x90] sm:$0x3f]
      %v343 = vsel %vm201, %v341, 0
      %345 = vmatpush.msra.mxu0 %v338
      %346 = vmatpush.msra.mxu0 %v337
      %347 = vmatpush.msra.mxu0 %v336
      %348 = vmatpush.msra.mxu0 %v335
      %349 = vmatpush.msra.mxu0 %v334
      %350 = vmatpush.msra.mxu0 %v333
      %351 = vmatpush.msra.mxu0 %v332
      %352 = vmatpush.msra.mxu0 %v331
      %353 = vmatpush.msra.mxu0 %v330
      %354 = vmatpush.msra.mxu0 %v329
      %355 = vmatpush.msra.mxu0 %v328
      %356 = vmatpush.msra.mxu0 %v327
      %357 = vmatpush.msra.mxu0 %v326
      %358 = vmatpush.msra.mxu0 %v325
      %359 = vmatpush.msra.mxu0 %v324
      %360 = vmatpush.msra.mxu0 %v323
      %361 = vmatmul.f32.gmra.mxu0 %v171
      %v362 = vpop.f32.mrf.mxu0
      %v363 = vadd.f32 0.0, %v362
      %364 = vmatmul.f32.gmra.mxu0 %v173
      %v365 = vpop.f32.mrf.mxu0
      %v366 = vadd.f32 0.0, %v365
      %367 = vdwg.mxu0
      %368 = vmatpush.msra.mxu0 0.0
      %369 = vmatpush.msra.mxu0 0.0
      %370 = vmatpush.msra.mxu0 0.0
      %371 = vmatpush.msra.mxu0 0.0
      %372 = vmatpush.msra.mxu0 0.0
      %373 = vmatpush.msra.mxu0 0.0
      %374 = vmatpush.msra.mxu0 0.0
      %375 = vmatpush.msra.mxu0 0.0
      %376 = vmatpush.msra.mxu0 0.0
      %377 = vmatpush.msra.mxu0 0.0
      %378 = vmatpush.msra.mxu0 0.0
      %379 = vmatpush.msra.mxu0 0.0
      %380 = vmatpush.msra.mxu0 0.0
      %381 = vmatpush.msra.mxu0 %v343
      %382 = vmatpush.msra.mxu0 %v340
      %383 = vmatpush.msra.mxu0 %v339
      %384 = vmatmul.f32.gmra.mxu0 %v196
      %v385 = vpop.f32.mrf.mxu0
      %v386 = vadd.f32 %v363, %v385
      %387 = vmatmul.f32.gmra.mxu0 %v199
      %v388 = vpop.f32.mrf.mxu0
      %v389 = vadd.f32 %v366, %v388
      %390 = vdwg.mxu0
      %v391 = vmax.f32 %v320, %v386
      %v392 = vmax.f32 %v321, %v389
      %s393 = scalar_lea.vmem %s165, 456
      %v394 = vld [vmem:[%s393] sm:$0xff]
      %v395 = vld [vmem:[%s393 + $0x8] sm:$0xff]
      %v396 = vld [vmem:[%s393 + $0x10] sm:$0xff]
      %v397 = vld [vmem:[%s393 + $0x18] sm:$0xff]
      %v398 = vld [vmem:[%s393 + $0x20] sm:$0xff]
      %v399 = vld [vmem:[%s393 + $0x28] sm:$0xff]
      %v400 = vld [vmem:[%s393 + $0x30] sm:$0xff]
      %v401 = vld [vmem:[%s393 + $0x38] sm:$0xff]
      %v402 = vld [vmem:[%s393 + $0x40] sm:$0xff]
      %v403 = vld [vmem:[%s393 + $0x48] sm:$0xff]
      %v404 = vld [vmem:[%s393 + $0x50] sm:$0xff]
      %v405 = vld [vmem:[%s393 + $0x58] sm:$0xff]
      %v406 = vld [vmem:[%s393 + $0x60] sm:$0xff]
      %v407 = vld [vmem:[%s393 + $0x68] sm:$0xff]
      %v408 = vld [vmem:[%s393 + $0x70] sm:$0xff]
      %v409 = vld [vmem:[%s393 + $0x78] sm:$0xff]
      %v410 = vld [vmem:[%s393 + $0x80] sm:$0xff]
      %v411 = vld [vmem:[%s393 + $0x88] sm:$0xff]
      %v412 = vld [vmem:[%s393 + $0x90] sm:$0x3f]
      %v414 = vsel %vm201, %v412, 0
      %416 = vmatpush.msra.mxu0 %v409
      %417 = vmatpush.msra.mxu0 %v408
      %418 = vmatpush.msra.mxu0 %v407
      %419 = vmatpush.msra.mxu0 %v406
      %420 = vmatpush.msra.mxu0 %v405
      %421 = vmatpush.msra.mxu0 %v404
      %422 = vmatpush.msra.mxu0 %v403
      %423 = vmatpush.msra.mxu0 %v402
      %424 = vmatpush.msra.mxu0 %v401
      %425 = vmatpush.msra.mxu0 %v400
      %426 = vmatpush.msra.mxu0 %v399
      %427 = vmatpush.msra.mxu0 %v398
      %428 = vmatpush.msra.mxu0 %v397
      %429 = vmatpush.msra.mxu0 %v396
      %430 = vmatpush.msra.mxu0 %v395
      %431 = vmatpush.msra.mxu0 %v394
      %432 = vmatmul.f32.gmra.mxu0 %v171
      %v433 = vpop.f32.mrf.mxu0
      %v434 = vadd.f32 0.0, %v433
      %435 = vmatmul.f32.gmra.mxu0 %v173
      %v436 = vpop.f32.mrf.mxu0
      %v437 = vadd.f32 0.0, %v436
      %438 = vdwg.mxu0
      %439 = vmatpush.msra.mxu0 0.0
      %440 = vmatpush.msra.mxu0 0.0
      %441 = vmatpush.msra.mxu0 0.0
      %442 = vmatpush.msra.mxu0 0.0
      %443 = vmatpush.msra.mxu0 0.0
      %444 = vmatpush.msra.mxu0 0.0
      %445 = vmatpush.msra.mxu0 0.0
      %446 = vmatpush.msra.mxu0 0.0
      %447 = vmatpush.msra.mxu0 0.0
      %448 = vmatpush.msra.mxu0 0.0
      %449 = vmatpush.msra.mxu0 0.0
      %450 = vmatpush.msra.mxu0 0.0
      %451 = vmatpush.msra.mxu0 0.0
      %452 = vmatpush.msra.mxu0 %v414
      %453 = vmatpush.msra.mxu0 %v411
      %454 = vmatpush.msra.mxu0 %v410
      %455 = vmatmul.f32.gmra.mxu0 %v196
      %v456 = vpop.f32.mrf.mxu0
      %v457 = vadd.f32 %v434, %v456
      %458 = vmatmul.f32.gmra.mxu0 %v199
      %v459 = vpop.f32.mrf.mxu0
      %v460 = vadd.f32 %v437, %v459
      %461 = vdwg.mxu0
      %v462 = vmax.f32 %v391, %v457
      %v463 = vmax.f32 %v392, %v460
      %v464 = vld [vmem:[%s2] sm:$0xff]
      %v465 = vld [vmem:[%s2 + $0x8] sm:$0xff]
      %467 = vset.pattern.permute.xlu0 0
      %468 = vperm.xlu0 %467, %v464
      %v469 = vpop.permute.xlu0 %468
      %472 = vset.pattern.permute.xlu0 0
      %473 = vperm.xlu0 %472, %v465
      %v474 = vpop.permute.xlu0 %473
      %v476 = vadd.f32 %v462, %v469
      %v477 = vadd.f32 %v463, %v474
      %v478 = vmax.f32 %v476, 0.0
      %v479 = vmax.f32 %v477, 0.0
      %vm480 = vcmask 203776
      %481 = vst.msk [vmem:[%s170] sm:$0xff] %vm480, %v478
      %482 = vst.msk [vmem:[%s170 + $0x8] sm:$0xff] %vm480, %v479
      %p483 = scmp.lt.s32.totalorder %s14, 1
      %s484 = scalar_select %p483, %s14, 1
      %s485 = smul.addr %s484, 2
      %s486 = smul.addr %s485, 8
      %s487 = scalar_lea.vmem %s3, %s486
      // Predicated region
      $region33: #{net_forward.4} parent=31 // pred_check
        %p488 = pneg %p100
      $region34: #{net_forward.4} parent=31 // pred_check_branch
        %490 = sbr.rel (%p488) target = $region36
      $region35: #{net_forward.4} parent=31 // pred_region
        _
      $region36: #{net_forward.4} parent=31 // pred_fallthru
        _
    $region32: #{net_forward.4} parent=5 // pred_fallthru
      _
    %p491 = scmp.le.s32.totalorder 2, %s9
    // Predicated region
    $region37: #{net_forward.4} parent=5 // pred_check
      %p492 = pneg %p491
    $region38: #{net_forward.4} parent=5 // pred_check_branch
      %494 = sbr.rel (%p492) target = $region40
    $region39: #{net_forward.4} parent=5 // pred_region
      %s495 = ssub.s32 %s9, 2
      // Predicated region
      $region41: #{net_forward.4} parent=39 // pred_check
        %p496 = pneg %p106
      $region42: #{net_forward.4} parent=39 // pred_check_branch
        %498 = sbr.rel (%p496) target = $region44
      $region43: #{net_forward.4} parent=39 // pred_region
        %p499 = scmp.lt.s32.totalorder %s15, 1
        %s500 = scalar_select %p499, %s15, 1
        %s501 = smul.addr %s500, 2
        %s502 = smul.addr %s501, 8
        %s503 = scalar_lea.vmem %s3, %s502
      $region44: #{net_forward.4} parent=39 // pred_fallthru
        _
    $region40: #{net_forward.4} parent=5 // pred_fallthru
      _
  $region6: #{net_forward.4} parent=0 // loop_footer
    %s13 = sadd.s32 1, %s9
  $region7: #{net_forward.4} parent=0 // loop_footer_branch
    %8 = sbr.rel target = $region3
  $region8: #{net_forward.4} parent=0 // loop_exit
    _

// kernel: net_forward.5
$region0: #{net_forward.5}
  #allocation0 [shape = 'u32[]', space=smem, size = 0x4, offset = 0x4, fixed_abs, tag = 'smem constant byte address 0x4 - core index']
  #allocation1 [shape = 'u32[72,128]{1,0:T(1,128)}', space=vmem, size = 0x9000, scoped, tag = 'internal scratch']
  %s0 = inlined_call_operand.vmem [shape: f32[2,400], index: 0, kind: input, shape index: {}]
  %s1 = inlined_call_operand.vmem [shape: f32[400,120], index: 1, kind: input, shape index: {}]
  %s2 = inlined_call_operand.vmem [shape: f32[1,120], index: 2, kind: input, shape index: {}]
  %s3 = inlined_call_operand.vmem [shape: f32[120,84], index: 3, kind: input, shape index: {}]
  %s4 = inlined_call_operand.vmem [shape: f32[1,84], index: 4, kind: input, shape index: {}]
  %s5 = inlined_call_operand.vmem [shape: f32[84,10], index: 5, kind: input, shape index: {}]
  %s6 = inlined_call_operand.vmem [shape: f32[1,10], index: 6, kind: input, shape index: {}]
  %s7 = inlined_call_operand.hbm [shape: f32[2,10], index: 7, kind: output, shape index: {}]
  %s8 = sld [smem:[#allocation0]]
  $region38: #{net_forward.5} parent=0
    _
  %s10 = ssub.s32 1, %s8
  %s11 = scalar_select 0, %s10, %s8
  $region1: #{net_forward.5} parent=0
    #allocation2 [shape = 'u8[1024]{0}', space=vmem, size = 0x400, scoped, tag = 'output window, operand 0, single buffered']
    #allocation3 [shape = 's32[1]{0}', space=sflag, size = 0x4, scoped, tag = 'scoped memory for net_forward.5']
    %12 = vsyncpa [#allocation3], 0
    // Predicated region
    $region2: #{net_forward.5} parent=1 // pred_check
      _
    $region3: #{net_forward.5} parent=1 // pred_check_branch
      %14 = sbr.rel (0) target = $region5
    $region4: #{net_forward.5} parent=1 // pred_region
      _
    $region5: #{net_forward.5} parent=1 // pred_fallthru
      _
    // Predicated region
    $region6: #{net_forward.5} parent=1 // pred_check
      _
    $region7: #{net_forward.5} parent=1 // pred_check_branch
      %16 = sbr.rel (0) target = $region9
    $region8: #{net_forward.5} parent=1 // pred_region
      _
    $region9: #{net_forward.5} parent=1 // pred_fallthru
      _
    // Predicated region
    $region10: #{net_forward.5} parent=1 // pred_check
      _
    $region11: #{net_forward.5} parent=1 // pred_check_branch
      %18 = sbr.rel (0) target = $region13
    $region12: #{net_forward.5} parent=1 // pred_region
      _
    $region13: #{net_forward.5} parent=1 // pred_fallthru
      _
    // Predicated region
    $region14: #{net_forward.5} parent=1 // pred_check
      _
    $region15: #{net_forward.5} parent=1 // pred_check_branch
      %20 = sbr.rel (0) target = $region17
    $region16: #{net_forward.5} parent=1 // pred_region
      _
    $region17: #{net_forward.5} parent=1 // pred_fallthru
      _
    // Predicated region
    $region18: #{net_forward.5} parent=1 // pred_check
      _
    $region19: #{net_forward.5} parent=1 // pred_check_branch
      %22 = sbr.rel (0) target = $region21
    $region20: #{net_forward.5} parent=1 // pred_region
      _
    $region21: #{net_forward.5} parent=1 // pred_fallthru
      _
    // Predicated region
    $region22: #{net_forward.5} parent=1 // pred_check
      _
    $region23: #{net_forward.5} parent=1 // pred_check_branch
      %24 = sbr.rel (0) target = $region25
    $region24: #{net_forward.5} parent=1 // pred_region
      _
    $region25: #{net_forward.5} parent=1 // pred_fallthru
      _
    // Predicated region
    $region26: #{net_forward.5} parent=1 // pred_check
      _
    $region27: #{net_forward.5} parent=1 // pred_check_branch
      %26 = sbr.rel (0) target = $region29
    $region28: #{net_forward.5} parent=1 // pred_region
      _
    $region29: #{net_forward.5} parent=1 // pred_fallthru
      _
    %v27 = vld [vmem:[%s0] sm:$0xff]
    %v28 = vld [vmem:[%s1] sm:$0xff]
    %v29 = vld [vmem:[%s1 + $0x8] sm:$0xff]
    %v30 = vld [vmem:[%s1 + $0x10] sm:$0xff]
    %v31 = vld [vmem:[%s1 + $0x18] sm:$0xff]
    %v32 = vld [vmem:[%s1 + $0x20] sm:$0xff]
    %v33 = vld [vmem:[%s1 + $0x28] sm:$0xff]
    %v34 = vld [vmem:[%s1 + $0x30] sm:$0xff]
    %v35 = vld [vmem:[%s1 + $0x38] sm:$0xff]
    %v36 = vld [vmem:[%s1 + $0x40] sm:$0xff]
    %v37 = vld [vmem:[%s1 + $0x48] sm:$0xff]
    %v38 = vld [vmem:[%s1 + $0x50] sm:$0xff]
    %v39 = vld [vmem:[%s1 + $0x58] sm:$0xff]
    %v40 = vld [vmem:[%s1 + $0x60] sm:$0xff]
    %v41 = vld [vmem:[%s1 + $0x68] sm:$0xff]
    %v42 = vld [vmem:[%s1 + $0x70] sm:$0xff]
    %v43 = vld [vmem:[%s1 + $0x78] sm:$0xff]
    %v44 = vld [vmem:[%s1 + $0x80] sm:$0xff]
    %v45 = vld [vmem:[%s1 + $0x88] sm:$0xff]
    %v46 = vld [vmem:[%s1 + $0x90] sm:$0xff]
    %v47 = vld [vmem:[%s1 + $0x98] sm:$0xff]
    %v48 = vld [vmem:[%s1 + $0xa0] sm:$0xff]
    %v49 = vld [vmem:[%s1 + $0xa8] sm:$0xff]
    %v50 = vld [vmem:[%s1 + $0xb0] sm:$0xff]
    %v51 = vld [vmem:[%s1 + $0xb8] sm:$0xff]
    %v52 = vld [vmem:[%s1 + $0xc0] sm:$0xff]
    %v53 = vld [vmem:[%s1 + $0xc8] sm:$0xff]
    %v54 = vld [vmem:[%s1 + $0xd0] sm:$0xff]
    %v55 = vld [vmem:[%s1 + $0xd8] sm:$0xff]
    %v56 = vld [vmem:[%s1 + $0xe0] sm:$0xff]
    %v57 = vld [vmem:[%s1 + $0xe8] sm:$0xff]
    %v58 = vld [vmem:[%s1 + $0xf0] sm:$0xff]
    %v59 = vld [vmem:[%s1 + $0xf8] sm:$0xff]
    %v60 = vld [vmem:[%s1 + $0x100] sm:$0xff]
    %v61 = vld [vmem:[%s1 + $0x108] sm:$0xff]
    %v62 = vld [vmem:[%s1 + $0x110] sm:$0xff]
    %v63 = vld [vmem:[%s1 + $0x118] sm:$0xff]
    %v64 = vld [vmem:[%s1 + $0x120] sm:$0xff]
    %v65 = vld [vmem:[%s1 + $0x128] sm:$0xff]
    %v66 = vld [vmem:[%s1 + $0x130] sm:$0xff]
    %v67 = vld [vmem:[%s1 + $0x138] sm:$0xff]
    %v68 = vld [vmem:[%s1 + $0x140] sm:$0xff]
    %v69 = vld [vmem:[%s1 + $0x148] sm:$0xff]
    %v70 = vld [vmem:[%s1 + $0x150] sm:$0xff]
    %v71 = vld [vmem:[%s1 + $0x158] sm:$0xff]
    %v72 = vld [vmem:[%s1 + $0x160] sm:$0xff]
    %v73 = vld [vmem:[%s1 + $0x168] sm:$0xff]
    %v74 = vld [vmem:[%s1 + $0x170] sm:$0xff]
    %v75 = vld [vmem:[%s1 + $0x178] sm:$0xff]
    %v76 = vld [vmem:[%s1 + $0x180] sm:$0xff]
    %v77 = vld [vmem:[%s1 + $0x188] sm:$0xff]
    %v78 = vld [vmem:[%s2] sm:$0x1]
    %v80 = vperm.slane %v78, 0
    %83 = vst [vmem:[#allocation1] ss:$4 sm:$0xff] %v27
    %v84 = vld.sshfl [vmem:[#allocation1] sm:$0xff pattern:$0x73625140]
    %v85 = vld.sshfl [vmem:[#allocation1 + $0x8] sm:$0xff pattern:$0x73625140]
    %v86 = vld.sshfl [vmem:[#allocation1 + $0x10] sm:$0xff pattern:$0x73625140]
    %v87 = vld.sshfl [vmem:[#allocation1 + $0x18] sm:$0xff pattern:$0x73625140]
    %vm91 = vcmask 130048
    %v92 = vsel %vm91, %v87, 0
    %94 = vmatpush.msra.mxu0 %v43
    %95 = vmatpush.msra.mxu0 %v42
    %96 = vmatpush.msra.mxu0 %v41
    %97 = vmatpush.msra.mxu0 %v40
    %98 = vmatpush.msra.mxu0 %v39
    %99 = vmatpush.msra.mxu0 %v38
    %100 = vmatpush.msra.mxu0 %v37
    %101 = vmatpush.msra.mxu0 %v36
    %102 = vmatpush.msra.mxu0 %v35
    %103 = vmatpush.msra.mxu0 %v34
    %104 = vmatpush.msra.mxu0 %v33
    %105 = vmatpush.msra.mxu0 %v32
    %106 = vmatpush.msra.mxu0 %v31
    %107 = vmatpush.msra.mxu0 %v30
    %108 = vmatpush.msra.mxu0 %v29
    %109 = vmatpush.msra.mxu0 %v28
    %110 = vmatmul.f32.gmra.mxu0 %v84
    %v111 = vpop.f32.mrf.mxu0
    %v112 = vadd.f32 %v80, %v111
    %113 = vdwg.mxu0
    %114 = vmatpush.msra.mxu0 %v59
    %115 = vmatpush.msra.mxu0 %v58
    %116 = vmatpush.msra.mxu0 %v57
    %117 = vmatpush.msra.mxu0 %v56
    %118 = vmatpush.msra.mxu0 %v55
    %119 = vmatpush.msra.mxu0 %v54
    %120 = vmatpush.msra.mxu0 %v53
    %121 = vmatpush.msra.mxu0 %v52
    %122 = vmatpush.msra.mxu0 %v51
    %123 = vmatpush.msra.mxu0 %v50
    %124 = vmatpush.msra.mxu0 %v49
    %125 = vmatpush.msra.mxu0 %v48
    %126 = vmatpush.msra.mxu0 %v47
    %127 = vmatpush.msra.mxu0 %v46
    %128 = vmatpush.msra.mxu0 %v45
    %129 = vmatpush.msra.mxu0 %v44
    %130 = vmatmul.f32.gmra.mxu0 %v85
    %v131 = vpop.f32.mrf.mxu0
    %v132 = vadd.f32 %v112, %v131
    %133 = vdwg.mxu0
    %134 = vmatpush.msra.mxu0 %v75
    %135 = vmatpush.msra.mxu0 %v74
    %136 = vmatpush.msra.mxu0 %v73
    %137 = vmatpush.msra.mxu0 %v72
    %138 = vmatpush.msra.mxu0 %v71
    %139 = vmatpush.msra.mxu0 %v70
    %140 = vmatpush.msra.mxu0 %v69
    %141 = vmatpush.msra.mxu0 %v68
    %142 = vmatpush.msra.mxu0 %v67
    %143 = vmatpush.msra.mxu0 %v66
    %144 = vmatpush.msra.mxu0 %v65
    %145 = vmatpush.msra.mxu0 %v64
    %146 = vmatpush.msra.mxu0 %v63
    %147 = vmatpush.msra.mxu0 %v62
    %148 = vmatpush.msra.mxu0 %v61
    %149 = vmatpush.msra.mxu0 %v60
    %150 = vmatmul.f32.gmra.mxu0 %v86
    %v151 = vpop.f32.mrf.mxu0
    %v152 = vadd.f32 %v132, %v151
    %153 = vdwg.mxu0
    %154 = vmatpush.msra.mxu0 0.0
    %155 = vmatpush.msra.mxu0 0.0
    %156 = vmatpush.msra.mxu0 0.0
    %157 = vmatpush.msra.mxu0 0.0
    %158 = vmatpush.msra.mxu0 0.0
    %159 = vmatpush.msra.mxu0 0.0
    %160 = vmatpush.msra.mxu0 0.0
    %161 = vmatpush.msra.mxu0 0.0
    %162 = vmatpush.msra.mxu0 0.0
    %163 = vmatpush.msra.mxu0 0.0
    %164 = vmatpush.msra.mxu0 0.0
    %165 = vmatpush.msra.mxu0 0.0
    %166 = vmatpush.msra.mxu0 0.0
    %167 = vmatpush.msra.mxu0 0.0
    %168 = vmatpush.msra.mxu0 %v77
    %169 = vmatpush.msra.mxu0 %v76
    %170 = vmatmul.f32.gmra.mxu0 %v92
    %v171 = vpop.f32.mrf.mxu0
    %v172 = vadd.f32 %v152, %v171
    %173 = vdwg.mxu0
    %v174 = vmax.f32 %v172, 0.0
    %v175 = vld [vmem:[%s3] sm:$0xff]
    %v176 = vld [vmem:[%s3 + $0x8] sm:$0xff]
    %v177 = vld [vmem:[%s3 + $0x10] sm:$0xff]
    %v178 = vld [vmem:[%s3 + $0x18] sm:$0xff]
    %v179 = vld [vmem:[%s3 + $0x20] sm:$0xff]
    %v180 = vld [vmem:[%s3 + $0x28] sm:$0xff]
    %v181 = vld [vmem:[%s3 + $0x30] sm:$0xff]
    %v182 = vld [vmem:[%s3 + $0x38] sm:$0xff]
    %v183 = vld [vmem:[%s3 + $0x40] sm:$0xff]
    %v184 = vld [vmem:[%s3 + $0x48] sm:$0xff]
    %v185 = vld [vmem:[%s3 + $0x50] sm:$0xff]
    %v186 = vld [vmem:[%s3 + $0x58] sm:$0xff]
    %v187 = vld [vmem:[%s3 + $0x60] sm:$0xff]
    %v188 = vld [vmem:[%s3 + $0x68] sm:$0xff]
    %v189 = vld [vmem:[%s3 + $0x70] sm:$0xff]
    %v190 = vld [vmem:[%s4] sm:$0x1]
    %v192 = vperm.slane %v190, 0
    %vm194 = vcmask 982016
    %v196 = vsel %vm194, %v174, 0
    %198 = vmatpush.msra.mxu0 0.0
    %199 = vmatpush.msra.mxu0 %v189
    %200 = vmatpush.msra.mxu0 %v188
    %201 = vmatpush.msra.mxu0 %v187
    %202 = vmatpush.msra.mxu0 %v186
    %203 = vmatpush.msra.mxu0 %v185
    %204 = vmatpush.msra.mxu0 %v184
    %205 = vmatpush.msra.mxu0 %v183
    %206 = vmatpush.msra.mxu0 %v182
    %207 = vmatpush.msra.mxu0 %v181
    %208 = vmatpush.msra.mxu0 %v180
    %209 = vmatpush.msra.mxu0 %v179
    %210 = vmatpush.msra.mxu0 %v178
    %211 = vmatpush.msra.mxu0 %v177
    %212 = vmatpush.msra.mxu0 %v176
    %213 = vmatpush.msra.mxu0 %v175
    %214 = vmatmul.f32.gmra.mxu0 %v196
    %v215 = vpop.f32.mrf.mxu0
    %v216 = vadd.f32 %v192, %v215
    %217 = vdwg.mxu0
    %v218 = vmax.f32 %v216, 0.0
    %v219 = vld [vmem:[%s5] sm:$0xff]
    %v220 = vld [vmem:[%s5 + $0x8] sm:$0xff]
    %v221 = vld [vmem:[%s5 + $0x10] sm:$0xff]
    %v222 = vld [vmem:[%s5 + $0x18] sm:$0xff]
    %v223 = vld [vmem:[%s5 + $0x20] sm:$0xff]
    %v224 = vld [vmem:[%s5 + $0x28] sm:$0xff]
    %v225 = vld [vmem:[%s5 + $0x30] sm:$0xff]
    %v226 = vld [vmem:[%s5 + $0x38] sm:$0xff]
    %v227 = vld [vmem:[%s5 + $0x40] sm:$0xff]
    %v228 = vld [vmem:[%s5 + $0x48] sm:$0xff]
    %v229 = vld [vmem:[%s5 + $0x50] sm:$0xf]
    %v230 = vld [vmem:[%s6] sm:$0x1]
    %v232 = vperm.slane %v230, 0
    %vm234 = vcmask 687104
    %v236 = vsel %vm234, %v218, 0
    %vm238 = vcmask 1043456
    %v240 = vsel %vm238, %v229, 0
    %242 = vmatpush.msra.mxu0 0.0
    %243 = vmatpush.msra.mxu0 0.0
    %244 = vmatpush.msra.mxu0 0.0
    %245 = vmatpush.msra.mxu0 0.0
    %246 = vmatpush.msra.mxu0 0.0
    %247 = vmatpush.msra.mxu0 %v240
    %248 = vmatpush.msra.mxu0 %v228
    %249 = vmatpush.msra.mxu0 %v227
    %250 = vmatpush.msra.mxu0 %v226
    %251 = vmatpush.msra.mxu0 %v225
    %252 = vmatpush.msra.mxu0 %v224
    %253 = vmatpush.msra.mxu0 %v223
    %254 = vmatpush.msra.mxu0 %v222
    %255 = vmatpush.msra.mxu0 %v221
    %256 = vmatpush.msra.mxu0 %v220
    %257 = vmatpush.msra.mxu0 %v219
    %258 = vmatmul.f32.gmra.mxu0 %v236
    %v259 = vpop.f32.mrf.mxu0
    %v260 = vadd.f32 %v232, %v259
    %261 = vdwg.mxu0
    %vm262 = vcmask 74752
    %263 = vst.msk [vmem:[#allocation2] sm:$0x3] %vm262, %v260
    // Predicated region
    $region30: #{net_forward.5} parent=1 // pred_check
      _
    $region31: #{net_forward.5} parent=1 // pred_check_branch
      %265 = sbr.rel (0) target = $region33
    $region32: #{net_forward.5} parent=1 // pred_region
      %267 = vsyncadd [#allocation3], 0
      %s269 = sshll.u32 [#allocation2], 4
      %s270 = int_to_ptr.vmem [resolvable:$true] %s269
      %s271 = sshll.u32 %s7, 4
      %s272 = int_to_ptr.hbm [resolvable:$true] %s271
      %274 = dma.vmem_to_hbm [thread:$0]  %s270, 32, %s272, [#allocation3]
    $region33: #{net_forward.5} parent=1 // pred_fallthru
      _
    // Predicated region
    $region34: #{net_forward.5} parent=1 // pred_check
      _
    $region35: #{net_forward.5} parent=1 // pred_check_branch
      %276 = sbr.rel (0) target = $region37
    $region36: #{net_forward.5} parent=1 // pred_region
      %278 = dma.done [#allocation3], 32
    $region37: #{net_forward.5} parent=1 // pred_fallthru
      _
    %279 = vsyncpa [#allocation3], 1

</llo_original>
